<compile_context>
chip_gen: v5e
topology: v5e:2x2
jax: 0.10.0
libtpu: 0.0.40
codegen_flags: <defaults>
</compile_context>

<pallas_src>
import functools

import jax
import jax.numpy as jnp
from jax.experimental import pallas as pl
from jax.experimental.pallas import tpu as pltpu

D_MODEL = 32
NUM_HEADS = 4
NUM_LAYERS = 2
IMAGE_SIZE = 4
FF_HIDDEN = 64
HEAD_DIM = D_MODEL // NUM_HEADS
LN_EPS = 1e-5


def _round_up(x, m):
    return ((x + m - 1) // m) * m


# ----------------------------------------------------------------------------
# Fused forward-pass kernel (single grid point, everything VMEM-resident)
# ----------------------------------------------------------------------------
def _generator_kernel(x_ref, pos_ref, emb_w_ref, fc_w_ref,
                      w_in_ref, w_out_ref, ff_w1_ref, ff_w2_ref,
                      slab_ref, gather_ref, scatter_ref,
                      out_ref, *, num_layers, batch, seq, f_pad):
    D, FF = D_MODEL, FF_HIDDEN
    f32 = jnp.float32

    def srow(r, w):
        # One packed-parameter row, first `w` lanes valid -> (1, w).
        return slab_ref[r:r + 1, 0:w]

    emb_b = srow(0, D)
    fc_b = srow(1, f_pad)

    gather_scaled = gather_ref[...]     # (D, H), 1/sqrt(hd) folded in
    scatter_m = scatter_ref[...]        # (H, D)

    def layer_norm(v, g, b):
        mu = jnp.mean(v, axis=-1, keepdims=True)
        var = jnp.mean(jnp.square(v - mu), axis=-1, keepdims=True)
        return (v - mu) * jax.lax.rsqrt(var + LN_EPS) * g + b

    # ---- embedding + positional embedding (pos replicated in-kernel) ----
    h = jnp.dot(x_ref[...], emb_w_ref[...], preferred_element_type=f32) + emb_b
    pos = pos_ref[...]                                       # (S, D)
    h = h + jnp.concatenate([pos] * batch, axis=0)           # (B*S, D)

    # ---- transformer blocks ----
    for li in range(num_layers):
        base = 2 + 8 * li
        w_in = w_in_ref[li]           # (D, 3D)
        w_out = w_out_ref[li]         # (D, D)
        ff_w1 = ff_w1_ref[li]         # (D, FF)
        ff_w2 = ff_w2_ref[li]         # (FF, D)
        b_in = srow(base + 0, 3 * D)
        b_out = srow(base + 1, D)
        ln1_g = srow(base + 2, D)
        ln1_b = srow(base + 3, D)
        ff_b1 = srow(base + 4, FF)
        ff_b2 = srow(base + 5, D)
        ln2_g = srow(base + 6, D)
        ln2_b = srow(base + 7, D)

        # --- multi-head self-attention over dim 0 (batch_first=False) ---
        qkv = jnp.dot(h, w_in, preferred_element_type=f32) + b_in   # (B*S, 3D)
        q = qkv[:, 0:D]
        k = qkv[:, D:2 * D]
        v = qkv[:, 2 * D:3 * D]
        q_blk = [q[i * seq:(i + 1) * seq, :] for i in range(batch)]
        k_blk = [k[i * seq:(i + 1) * seq, :] for i in range(batch)]
        v_blk = [v[i * seq:(i + 1) * seq, :] for i in range(batch)]

        # All (i, j) pairwise per-head scores with ONE tall MXU push.
        qk_stack = jnp.concatenate(
            [q_blk[i] * k_blk[j] for i in range(batch) for j in range(batch)],
            axis=0)                                          # (B*B*S, D)
        scores_all = jnp.dot(qk_stack, gather_scaled,
                             preferred_element_type=f32)     # (B*B*S, H)

        # Stable softmax over key positions j (size batch) per query pos i.
        pw_blocks = []
        for i in range(batch):
            sc = [scores_all[(i * batch + j) * seq:(i * batch + j + 1) * seq, :]
                  for j in range(batch)]
            m = sc[0]
            for s_ in sc[1:]:
                m = jnp.maximum(m, s_)
            ex = [jnp.exp(s_ - m) for s_ in sc]
            denom = ex[0]
            for e in ex[1:]:
                denom = denom + e
            inv = pl.reciprocal(denom, approx=True)          # EUP slot, ~free
            pw_blocks += [e * inv for e in ex]
        pw_stack = jnp.concatenate(pw_blocks, axis=0)        # (B*B*S, H)

        # Replicate per-head probs back across head lanes with ONE matmul.
        p_all = jnp.dot(pw_stack, scatter_m,
                        preferred_element_type=f32)          # (B*B*S, D)

        # Weighted-value accumulation, kept in registers (no VMEM scratch).
        attn_blocks = []
        for i in range(batch):
            o_i = p_all[(i * batch) * seq:(i * batch + 1) * seq, :] * v_blk[0]
            for j in range(1, batch):
                o_i = o_i + p_all[(i * batch + j) * seq:
                                  (i * batch + j + 1) * seq, :] * v_blk[j]
            attn_blocks.append(o_i)
        attn_cat = jnp.concatenate(attn_blocks, axis=0)      # (B*S, D)

        attn = jnp.dot(attn_cat, w_out, preferred_element_type=f32) + b_out
        h = layer_norm(h + attn, ln1_g, ln1_b)

        # --- feed-forward ---
        ff = jnp.dot(h, ff_w1, preferred_element_type=f32) + ff_b1
        ff = jnp.maximum(ff, 0.0)
        ff = jnp.dot(ff, ff_w2, preferred_element_type=f32) + ff_b2
        h = layer_norm(h + ff, ln2_g, ln2_b)

    # ---- final projection + sigmoid (lane-dense 128-wide store) ----
    logits = jnp.dot(h, fc_w_ref[...], preferred_element_type=f32) + fc_b
    out_ref[...] = jax.nn.sigmoid(logits).astype(out_ref.dtype)


def generator_forward(x, params):
    """x: (B, S, 3*img*img) with S = img*img -> (B*S, 3, img, img)."""
    B, S, F = x.shape
    num_layers = len(params["layers"])
    x2d = x.reshape(B * S, F)
    pos = params["pos_emb"].reshape(S, D_MODEL)

    # Lane-dense final projection: pad fc output dim to a multiple of 128.
    F_pad = _round_up(F, 128)
    fc_w_p = jnp.zeros((D_MODEL, F_pad), jnp.float32).at[:, :F].set(params["fc_w"])

    # Packed small-parameter slab: one row per bias / LN vector.
    maxw = max(128, 3 * D_MODEL, FF_HIDDEN, F_pad)
    n_rows = 2 + 8 * num_layers
    slab = jnp.zeros((n_rows, maxw), jnp.float32)
    slab = slab.at[0, :D_MODEL].set(params["emb_b"])
    slab = slab.at[1, :F].set(params["fc_b"])
    for li, lp in enumerate(params["layers"]):
        base = 2 + 8 * li
        slab = slab.at[base + 0, :3 * D_MODEL].set(lp["attn"]["b_in"])
        slab = slab.at[base + 1, :D_MODEL].set(lp["attn"]["b_out"])
        slab = slab.at[base + 2, :D_MODEL].set(lp["ln1_g"])
        slab = slab.at[base + 3, :D_MODEL].set(lp["ln1_b"])
        slab = slab.at[base + 4, :FF_HIDDEN].set(lp["ff_b1"])
        slab = slab.at[base + 5, :D_MODEL].set(lp["ff_b2"])
        slab = slab.at[base + 6, :D_MODEL].set(lp["ln2_g"])
        slab = slab.at[base + 7, :D_MODEL].set(lp["ln2_b"])

    # Per-layer weight matrices stacked along a leading layer axis.
    w_in_all = jnp.stack([lp["attn"]["w_in"] for lp in params["layers"]])
    w_out_all = jnp.stack([lp["attn"]["w_out"] for lp in params["layers"]])
    ff_w1_all = jnp.stack([lp["ff_w1"] for lp in params["layers"]])
    ff_w2_all = jnp.stack([lp["ff_w2"] for lp in params["layers"]])

    # Precomputed head-grouping masks (constant, scale folded into gather).
    hd = HEAD_DIM
    d_idx = jnp.arange(D_MODEL)
    h_idx = jnp.arange(NUM_HEADS)
    gather_scaled = ((d_idx[:, None] // hd) == h_idx[None, :]).astype(
        jnp.float32) * (1.0 / float(hd) ** 0.5)                    # (D, H)
    scatter_m = (h_idx[:, None] == (d_idx[None, :] // hd)).astype(
        jnp.float32)                                               # (H, D)

    flat_inputs = [x2d, pos, params["emb_w"], fc_w_p,
                   w_in_all, w_out_all, ff_w1_all, ff_w2_all,
                   slab, gather_scaled, scatter_m]

    kernel = functools.partial(_generator_kernel, num_layers=num_layers,
                               batch=B, seq=S, f_pad=F_pad)
    # Single fused kernel, no grid: every array mapped whole into VMEM.
    out = pl.pallas_call(
        kernel,
        out_shape=jax.ShapeDtypeStruct((B * S, F_pad), jnp.float32),
        in_specs=[pl.BlockSpec(memory_space=pltpu.MemorySpace.VMEM)]
        * len(flat_inputs),
        out_specs=pl.BlockSpec(memory_space=pltpu.MemorySpace.VMEM),
    )(*flat_inputs)
    return out[:, :F].reshape(-1, 3, IMAGE_SIZE, IMAGE_SIZE)


# ----------------------------------------------------------------------------
# Pure-JAX reference (same math, for validation)
# ----------------------------------------------------------------------------
def _ln_ref(x, g, b):
    mu = jnp.mean(x, axis=-1, keepdims=True)
    var = jnp.mean(jnp.square(x - mu), axis=-1, keepdims=True)
    return (x - mu) * jax.lax.rsqrt(var + LN_EPS) * g + b


def reference_forward(x, params):
    B, S, F = x.shape
    h = x.reshape(B * S, F) @ params["emb_w"] + params["emb_b"]
    h = h.reshape(B, S, D_MODEL) + params["pos_emb"]
    for lp in params["layers"]:
        L, N, d = h.shape                                  # attention over dim 0
        qkv = h.reshape(L * N, d) @ lp["attn"]["w_in"] + lp["attn"]["b_in"]
        qkv = qkv.reshape(L, N, 3, NUM_HEADS, HEAD_DIM)
        q, k, v = qkv[:, :, 0], qkv[:, :, 1], qkv[:, :, 2]  # (L, N, H, hd)
        scores = jnp.einsum("lnhd,mnhd->nhlm", q, k) / jnp.sqrt(jnp.float32(HEAD_DIM))
        p = jax.nn.softmax(scores, axis=-1)
        o = jnp.einsum("nhlm,mnhd->lnhd", p, v).reshape(L * N, d)
        o = o @ lp["attn"]["w_out"] + lp["attn"]["b_out"]
        hx = _ln_ref(h.reshape(L * N, d) + o, lp["ln1_g"], lp["ln1_b"])
        ff = jnp.maximum(hx @ lp["ff_w1"] + lp["ff_b1"], 0.0) @ lp["ff_w2"] + lp["ff_b2"]
        hx = _ln_ref(hx + ff, lp["ln2_g"], lp["ln2_b"])
        h = hx.reshape(L, N, d)
    out = jax.nn.sigmoid(h.reshape(B * S, D_MODEL) @ params["fc_w"] + params["fc_b"])
    return out.reshape(-1, 3, IMAGE_SIZE, IMAGE_SIZE)


# ----------------------------------------------------------------------------
# Deterministic parameter init (synthetic weights, not a checkpoint)
# ----------------------------------------------------------------------------
def _dense(key, fan_in, fan_out):
    kw, kb = jax.random.split(key)
    w = jax.random.normal(kw, (fan_in, fan_out), jnp.float32) / jnp.sqrt(
        jnp.float32(fan_in))
    b = jax.random.normal(kb, (fan_out,), jnp.float32) * 0.01
    return w, b


def init_params(key):
    S = IMAGE_SIZE * IMAGE_SIZE
    F = 3 * IMAGE_SIZE * IMAGE_SIZE
    keys = jax.random.split(key, 3 + NUM_LAYERS)
    params = {}
    params["pos_emb"] = jax.random.normal(keys[0], (1, S, D_MODEL), jnp.float32)
    params["emb_w"], params["emb_b"] = _dense(keys[1], F, D_MODEL)
    params["fc_w"], params["fc_b"] = _dense(keys[2], D_MODEL, F)
    layers = []
    for li in range(NUM_LAYERS):
        lk = jax.random.split(keys[3 + li], 5)
        w_in, b_in = _dense(lk[0], D_MODEL, 3 * D_MODEL)     # qkv in_proj
        w_out, b_out = _dense(lk[1], D_MODEL, D_MODEL)       # attn out_proj
        ff_w1, ff_b1 = _dense(lk[2], D_MODEL, FF_HIDDEN)
        ff_w2, ff_b2 = _dense(lk[3], FF_HIDDEN, D_MODEL)
        layers.append({
            "attn": {"w_in": w_in, "b_in": b_in, "w_out": w_out, "b_out": b_out},
            "ln1_g": jnp.ones((D_MODEL,), jnp.float32),
            "ln1_b": jnp.zeros((D_MODEL,), jnp.float32),
            "ff_w1": ff_w1, "ff_b1": ff_b1,
            "ff_w2": ff_w2, "ff_b2": ff_b2,
            "ln2_g": jnp.ones((D_MODEL,), jnp.float32),
            "ln2_b": jnp.zeros((D_MODEL,), jnp.float32),
        })
    params["layers"] = layers
    return params


if __name__ == "__main__":
    key = jax.random.PRNGKey(0)
    pkey, xkey = jax.random.split(key)
    params = init_params(pkey)

    B = 2
    S = IMAGE_SIZE * IMAGE_SIZE
    F = 3 * IMAGE_SIZE * IMAGE_SIZE
    x = jax.random.normal(xkey, (B, S, F), jnp.float32)

    out = jax.jit(generator_forward)(x, params)
    out = jax.block_until_ready(out)

    assert out.shape == (B * S, 3, IMAGE_SIZE, IMAGE_SIZE), out.shape
    assert bool(jnp.all(jnp.isfinite(out)))
    assert bool(jnp.all((out >= 0.0) & (out <= 1.0)))   # sigmoid range

    ref = jax.block_until_ready(jax.jit(reference_forward)(x, params))
    max_err = float(jnp.max(jnp.abs(out - ref)))
    assert max_err < 2e-2, f"max abs err vs JAX reference: {max_err}"

    print("KERNEL_OK")
</pallas_src>

<mosaic_0001>
module attributes {stable_mosaic.version = 11 : i64} {
  func.func @_generator_kernel(%arg0: memref<32x48xf32, #tpu.memory_space<vmem>>, %arg1: memref<16x32xf32, #tpu.memory_space<vmem>>, %arg2: memref<48x32xf32, #tpu.memory_space<vmem>>, %arg3: memref<32x128xf32, #tpu.memory_space<vmem>>, %arg4: memref<2x32x96xf32, #tpu.memory_space<vmem>>, %arg5: memref<2x32x32xf32, #tpu.memory_space<vmem>>, %arg6: memref<2x32x64xf32, #tpu.memory_space<vmem>>, %arg7: memref<2x64x32xf32, #tpu.memory_space<vmem>>, %arg8: memref<18x128xf32, #tpu.memory_space<vmem>>, %arg9: memref<32x4xf32, #tpu.memory_space<vmem>>, %arg10: memref<4x32xf32, #tpu.memory_space<vmem>>, %arg11: memref<32x128xf32, #tpu.memory_space<vmem>>) attributes {dimension_semantics = [], scalar_prefetch = 0 : i64, scratch_operands = 0 : i64, tpu.core_type = #tpu.core_type<tc>} {
    %c0 = arith.constant 0 : index
    %c0_0 = arith.constant 0 : index
    %0 = vector.load %arg8[%c0, %c0_0] : memref<18x128xf32, #tpu.memory_space<vmem>>, vector<1x32xf32>
    %c1 = arith.constant 1 : index
    %c0_1 = arith.constant 0 : index
    %1 = vector.load %arg8[%c1, %c0_1] : memref<18x128xf32, #tpu.memory_space<vmem>>, vector<1x128xf32>
    %c0_2 = arith.constant 0 : index
    %c0_3 = arith.constant 0 : index
    %2 = vector.load %arg9[%c0_2, %c0_3] : memref<32x4xf32, #tpu.memory_space<vmem>>, vector<32x4xf32>
    %c0_4 = arith.constant 0 : index
    %c0_5 = arith.constant 0 : index
    %3 = vector.load %arg10[%c0_4, %c0_5] : memref<4x32xf32, #tpu.memory_space<vmem>>, vector<4x32xf32>
    %c0_6 = arith.constant 0 : index
    %c0_7 = arith.constant 0 : index
    %4 = vector.load %arg0[%c0_6, %c0_7] : memref<32x48xf32, #tpu.memory_space<vmem>>, vector<32x48xf32>
    %c0_8 = arith.constant 0 : index
    %c0_9 = arith.constant 0 : index
    %5 = vector.load %arg2[%c0_8, %c0_9] : memref<48x32xf32, #tpu.memory_space<vmem>>, vector<48x32xf32>
    %cst = arith.constant dense<0.000000e+00> : vector<32x32xf32>
    %6 = tpu.matmul %4, %5, %cst {dimension_numbers = #tpu.dot_dimension_numbers<[1], [0], [0], [1], [0, 0, 1, 1], [], []>} : vector<32x48xf32>, vector<48x32xf32>, vector<32x32xf32> -> vector<32x32xf32>
    %7 = vector.broadcast %0 : vector<1x32xf32> to vector<32x32xf32>
    %8 = arith.addf %6, %7 : vector<32x32xf32>
    %c0_10 = arith.constant 0 : index
    %c0_11 = arith.constant 0 : index
    %9 = vector.load %arg1[%c0_10, %c0_11] : memref<16x32xf32, #tpu.memory_space<vmem>>, vector<16x32xf32>
    %10 = tpu.concatenate %9, %9 in 0 : vector<16x32xf32>, vector<16x32xf32> -> vector<32x32xf32>
    %11 = arith.addf %8, %10 : vector<32x32xf32>
    %c0_12 = arith.constant 0 : index
    %c0_13 = arith.constant 0 : index
    %c0_14 = arith.constant 0 : index
    %12 = vector.load %arg4[%c0_12, %c0_13, %c0_14] : memref<2x32x96xf32, #tpu.memory_space<vmem>>, vector<1x32x96xf32>
    %13 = vector.shape_cast %12 : vector<1x32x96xf32> to vector<32x96xf32>
    %c0_15 = arith.constant 0 : index
    %c0_16 = arith.constant 0 : index
    %c0_17 = arith.constant 0 : index
    %14 = vector.load %arg5[%c0_15, %c0_16, %c0_17] : memref<2x32x32xf32, #tpu.memory_space<vmem>>, vector<1x32x32xf32>
    %15 = vector.shape_cast %14 : vector<1x32x32xf32> to vector<32x32xf32>
    %c0_18 = arith.constant 0 : index
    %c0_19 = arith.constant 0 : index
    %c0_20 = arith.constant 0 : index
    %16 = vector.load %arg6[%c0_18, %c0_19, %c0_20] : memref<2x32x64xf32, #tpu.memory_space<vmem>>, vector<1x32x64xf32>
    %17 = vector.shape_cast %16 : vector<1x32x64xf32> to vector<32x64xf32>
    %c0_21 = arith.constant 0 : index
    %c0_22 = arith.constant 0 : index
    %c0_23 = arith.constant 0 : index
    %18 = vector.load %arg7[%c0_21, %c0_22, %c0_23] : memref<2x64x32xf32, #tpu.memory_space<vmem>>, vector<1x64x32xf32>
    %19 = vector.shape_cast %18 : vector<1x64x32xf32> to vector<64x32xf32>
    %c2 = arith.constant 2 : index
    %c0_24 = arith.constant 0 : index
    %20 = vector.load %arg8[%c2, %c0_24] : memref<18x128xf32, #tpu.memory_space<vmem>>, vector<1x96xf32>
    %c3 = arith.constant 3 : index
    %c0_25 = arith.constant 0 : index
    %21 = vector.load %arg8[%c3, %c0_25] : memref<18x128xf32, #tpu.memory_space<vmem>>, vector<1x32xf32>
    %c4 = arith.constant 4 : index
    %c0_26 = arith.constant 0 : index
    %22 = vector.load %arg8[%c4, %c0_26] : memref<18x128xf32, #tpu.memory_space<vmem>>, vector<1x32xf32>
    %c5 = arith.constant 5 : index
    %c0_27 = arith.constant 0 : index
    %23 = vector.load %arg8[%c5, %c0_27] : memref<18x128xf32, #tpu.memory_space<vmem>>, vector<1x32xf32>
    %c6 = arith.constant 6 : index
    %c0_28 = arith.constant 0 : index
    %24 = vector.load %arg8[%c6, %c0_28] : memref<18x128xf32, #tpu.memory_space<vmem>>, vector<1x64xf32>
    %c7 = arith.constant 7 : index
    %c0_29 = arith.constant 0 : index
    %25 = vector.load %arg8[%c7, %c0_29] : memref<18x128xf32, #tpu.memory_space<vmem>>, vector<1x32xf32>
    %c8 = arith.constant 8 : index
    %c0_30 = arith.constant 0 : index
    %26 = vector.load %arg8[%c8, %c0_30] : memref<18x128xf32, #tpu.memory_space<vmem>>, vector<1x32xf32>
    %c9 = arith.constant 9 : index
    %c0_31 = arith.constant 0 : index
    %27 = vector.load %arg8[%c9, %c0_31] : memref<18x128xf32, #tpu.memory_space<vmem>>, vector<1x32xf32>
    %cst_32 = arith.constant dense<0.000000e+00> : vector<32x96xf32>
    %28 = tpu.matmul %11, %13, %cst_32 {dimension_numbers = #tpu.dot_dimension_numbers<[1], [0], [0], [1], [0, 0, 1, 1], [], []>} : vector<32x32xf32>, vector<32x96xf32>, vector<32x96xf32> -> vector<32x96xf32>
    %29 = vector.broadcast %20 : vector<1x96xf32> to vector<32x96xf32>
    %30 = arith.addf %28, %29 : vector<32x96xf32>
    %31 = vector.extract_strided_slice %30 {offsets = [0, 0], sizes = [32, 32], strides = [1, 1]} : vector<32x96xf32> to vector<32x32xf32>
    %32 = vector.extract_strided_slice %30 {offsets = [0, 32], sizes = [32, 32], strides = [1, 1]} : vector<32x96xf32> to vector<32x32xf32>
    %33 = vector.extract_strided_slice %30 {offsets = [0, 64], sizes = [32, 32], strides = [1, 1]} : vector<32x96xf32> to vector<32x32xf32>
    %34 = vector.extract_strided_slice %31 {offsets = [0, 0], sizes = [16, 32], strides = [1, 1]} : vector<32x32xf32> to vector<16x32xf32>
    %35 = vector.extract_strided_slice %31 {offsets = [16, 0], sizes = [16, 32], strides = [1, 1]} : vector<32x32xf32> to vector<16x32xf32>
    %36 = vector.extract_strided_slice %32 {offsets = [0, 0], sizes = [16, 32], strides = [1, 1]} : vector<32x32xf32> to vector<16x32xf32>
    %37 = vector.extract_strided_slice %32 {offsets = [16, 0], sizes = [16, 32], strides = [1, 1]} : vector<32x32xf32> to vector<16x32xf32>
    %38 = vector.extract_strided_slice %33 {offsets = [0, 0], sizes = [16, 32], strides = [1, 1]} : vector<32x32xf32> to vector<16x32xf32>
    %39 = vector.extract_strided_slice %33 {offsets = [16, 0], sizes = [16, 32], strides = [1, 1]} : vector<32x32xf32> to vector<16x32xf32>
    %40 = arith.mulf %34, %36 : vector<16x32xf32>
    %41 = arith.mulf %34, %37 : vector<16x32xf32>
    %42 = arith.mulf %35, %36 : vector<16x32xf32>
    %43 = arith.mulf %35, %37 : vector<16x32xf32>
    %44 = tpu.concatenate %40, %41, %42, %43 in 0 : vector<16x32xf32>, vector<16x32xf32>, vector<16x32xf32>, vector<16x32xf32> -> vector<64x32xf32>
    %cst_33 = arith.constant dense<0.000000e+00> : vector<64x4xf32>
    %45 = tpu.matmul %44, %2, %cst_33 {dimension_numbers = #tpu.dot_dimension_numbers<[1], [0], [0], [1], [0, 0, 1, 1], [], []>} : vector<64x32xf32>, vector<32x4xf32>, vector<64x4xf32> -> vector<64x4xf32>
    %46 = vector.extract_strided_slice %45 {offsets = [0, 0], sizes = [16, 4], strides = [1, 1]} : vector<64x4xf32> to vector<16x4xf32>
    %47 = vector.extract_strided_slice %45 {offsets = [16, 0], sizes = [16, 4], strides = [1, 1]} : vector<64x4xf32> to vector<16x4xf32>
    %48 = arith.maximumf %46, %47 : vector<16x4xf32>
    %49 = arith.subf %46, %48 : vector<16x4xf32>
    %50 = math.exp %49 : vector<16x4xf32>
    %51 = arith.subf %47, %48 : vector<16x4xf32>
    %52 = math.exp %51 : vector<16x4xf32>
    %53 = arith.addf %50, %52 : vector<16x4xf32>
    %54 = tpu.reciprocal %53 {approx = true} : vector<16x4xf32> -> vector<16x4xf32>
    %55 = arith.mulf %50, %54 : vector<16x4xf32>
    %56 = arith.mulf %52, %54 : vector<16x4xf32>
    %57 = vector.extract_strided_slice %45 {offsets = [32, 0], sizes = [16, 4], strides = [1, 1]} : vector<64x4xf32> to vector<16x4xf32>
    %58 = vector.extract_strided_slice %45 {offsets = [48, 0], sizes = [16, 4], strides = [1, 1]} : vector<64x4xf32> to vector<16x4xf32>
    %59 = arith.maximumf %57, %58 : vector<16x4xf32>
    %60 = arith.subf %57, %59 : vector<16x4xf32>
    %61 = math.exp %60 : vector<16x4xf32>
    %62 = arith.subf %58, %59 : vector<16x4xf32>
    %63 = math.exp %62 : vector<16x4xf32>
    %64 = arith.addf %61, %63 : vector<16x4xf32>
    %65 = tpu.reciprocal %64 {approx = true} : vector<16x4xf32> -> vector<16x4xf32>
    %66 = arith.mulf %61, %65 : vector<16x4xf32>
    %67 = arith.mulf %63, %65 : vector<16x4xf32>
    %68 = tpu.concatenate %55, %56, %66, %67 in 0 : vector<16x4xf32>, vector<16x4xf32>, vector<16x4xf32>, vector<16x4xf32> -> vector<64x4xf32>
    %cst_34 = arith.constant dense<0.000000e+00> : vector<64x32xf32>
    %69 = tpu.matmul %68, %3, %cst_34 {dimension_numbers = #tpu.dot_dimension_numbers<[1], [0], [0], [1], [0, 0, 1, 1], [], []>} : vector<64x4xf32>, vector<4x32xf32>, vector<64x32xf32> -> vector<64x32xf32>
    %70 = vector.extract_strided_slice %69 {offsets = [0, 0], sizes = [16, 32], strides = [1, 1]} : vector<64x32xf32> to vector<16x32xf32>
    %71 = arith.mulf %70, %38 : vector<16x32xf32>
    %72 = vector.extract_strided_slice %69 {offsets = [16, 0], sizes = [16, 32], strides = [1, 1]} : vector<64x32xf32> to vector<16x32xf32>
    %73 = arith.mulf %72, %39 : vector<16x32xf32>
    %74 = arith.addf %71, %73 : vector<16x32xf32>
    %75 = vector.extract_strided_slice %69 {offsets = [32, 0], sizes = [16, 32], strides = [1, 1]} : vector<64x32xf32> to vector<16x32xf32>
    %76 = arith.mulf %75, %38 : vector<16x32xf32>
    %77 = vector.extract_strided_slice %69 {offsets = [48, 0], sizes = [16, 32], strides = [1, 1]} : vector<64x32xf32> to vector<16x32xf32>
    %78 = arith.mulf %77, %39 : vector<16x32xf32>
    %79 = arith.addf %76, %78 : vector<16x32xf32>
    %80 = tpu.concatenate %74, %79 in 0 : vector<16x32xf32>, vector<16x32xf32> -> vector<32x32xf32>
    %cst_35 = arith.constant dense<0.000000e+00> : vector<32x32xf32>
    %81 = tpu.matmul %80, %15, %cst_35 {dimension_numbers = #tpu.dot_dimension_numbers<[1], [0], [0], [1], [0, 0, 1, 1], [], []>} : vector<32x32xf32>, vector<32x32xf32>, vector<32x32xf32> -> vector<32x32xf32>
    %82 = vector.broadcast %21 : vector<1x32xf32> to vector<32x32xf32>
    %83 = arith.addf %81, %82 : vector<32x32xf32>
    %84 = arith.addf %11, %83 : vector<32x32xf32>
    %cst_36 = arith.constant dense<0.000000e+00> : vector<32xf32>
    %85 = vector.multi_reduction <add>, %84, %cst_36 [1] : vector<32x32xf32> to vector<32xf32>
    %86 = vector.shape_cast %85 : vector<32xf32> to vector<32x1xf32>
    %cst_37 = arith.constant 3.200000e+01 : f32
    %87 = vector.broadcast %cst_37 : f32 to vector<32x1xf32>
    %88 = arith.divf %86, %87 : vector<32x1xf32>
    %89 = vector.broadcast %88 : vector<32x1xf32> to vector<32x32xf32>
    %90 = arith.subf %84, %89 : vector<32x32xf32>
    %91 = arith.mulf %90, %90 : vector<32x32xf32>
    %cst_38 = arith.constant dense<0.000000e+00> : vector<32xf32>
    %92 = vector.multi_reduction <add>, %91, %cst_38 [1] : vector<32x32xf32> to vector<32xf32>
    %93 = vector.shape_cast %92 : vector<32xf32> to vector<32x1xf32>
    %cst_39 = arith.constant 3.200000e+01 : f32
    %94 = vector.broadcast %cst_39 : f32 to vector<32x1xf32>
    %95 = arith.divf %93, %94 : vector<32x1xf32>
    %96 = vector.broadcast %88 : vector<32x1xf32> to vector<32x32xf32>
    %97 = arith.subf %84, %96 : vector<32x32xf32>
    %cst_40 = arith.constant 9.99999974E-6 : f32
    %98 = vector.broadcast %cst_40 : f32 to vector<32x1xf32>
    %99 = arith.addf %95, %98 : vector<32x1xf32>
    %100 = math.rsqrt %99 : vector<32x1xf32>
    %101 = vector.broadcast %100 : vector<32x1xf32> to vector<32x32xf32>
    %102 = arith.mulf %97, %101 : vector<32x32xf32>
    %103 = vector.broadcast %22 : vector<1x32xf32> to vector<32x32xf32>
    %104 = arith.mulf %102, %103 : vector<32x32xf32>
    %105 = vector.broadcast %23 : vector<1x32xf32> to vector<32x32xf32>
    %106 = arith.addf %104, %105 : vector<32x32xf32>
    %cst_41 = arith.constant dense<0.000000e+00> : vector<32x64xf32>
    %107 = tpu.matmul %106, %17, %cst_41 {dimension_numbers = #tpu.dot_dimension_numbers<[1], [0], [0], [1], [0, 0, 1, 1], [], []>} : vector<32x32xf32>, vector<32x64xf32>, vector<32x64xf32> -> vector<32x64xf32>
    %108 = vector.broadcast %24 : vector<1x64xf32> to vector<32x64xf32>
    %109 = arith.addf %107, %108 : vector<32x64xf32>
    %cst_42 = arith.constant 0.000000e+00 : f32
    %110 = vector.broadcast %cst_42 : f32 to vector<32x64xf32>
    %111 = arith.maximumf %109, %110 : vector<32x64xf32>
    %cst_43 = arith.constant dense<0.000000e+00> : vector<32x32xf32>
    %112 = tpu.matmul %111, %19, %cst_43 {dimension_numbers = #tpu.dot_dimension_numbers<[1], [0], [0], [1], [0, 0, 1, 1], [], []>} : vector<32x64xf32>, vector<64x32xf32>, vector<32x32xf32> -> vector<32x32xf32>
    %113 = vector.broadcast %25 : vector<1x32xf32> to vector<32x32xf32>
    %114 = arith.addf %112, %113 : vector<32x32xf32>
    %115 = arith.addf %106, %114 : vector<32x32xf32>
    %cst_44 = arith.constant dense<0.000000e+00> : vector<32xf32>
    %116 = vector.multi_reduction <add>, %115, %cst_44 [1] : vector<32x32xf32> to vector<32xf32>
    %117 = vector.shape_cast %116 : vector<32xf32> to vector<32x1xf32>
    %cst_45 = arith.constant 3.200000e+01 : f32
    %118 = vector.broadcast %cst_45 : f32 to vector<32x1xf32>
    %119 = arith.divf %117, %118 : vector<32x1xf32>
    %120 = vector.broadcast %119 : vector<32x1xf32> to vector<32x32xf32>
    %121 = arith.subf %115, %120 : vector<32x32xf32>
    %122 = arith.mulf %121, %121 : vector<32x32xf32>
    %cst_46 = arith.constant dense<0.000000e+00> : vector<32xf32>
    %123 = vector.multi_reduction <add>, %122, %cst_46 [1] : vector<32x32xf32> to vector<32xf32>
    %124 = vector.shape_cast %123 : vector<32xf32> to vector<32x1xf32>
    %cst_47 = arith.constant 3.200000e+01 : f32
    %125 = vector.broadcast %cst_47 : f32 to vector<32x1xf32>
    %126 = arith.divf %124, %125 : vector<32x1xf32>
    %127 = vector.broadcast %119 : vector<32x1xf32> to vector<32x32xf32>
    %128 = arith.subf %115, %127 : vector<32x32xf32>
    %cst_48 = arith.constant 9.99999974E-6 : f32
    %129 = vector.broadcast %cst_48 : f32 to vector<32x1xf32>
    %130 = arith.addf %126, %129 : vector<32x1xf32>
    %131 = math.rsqrt %130 : vector<32x1xf32>
    %132 = vector.broadcast %131 : vector<32x1xf32> to vector<32x32xf32>
    %133 = arith.mulf %128, %132 : vector<32x32xf32>
    %134 = vector.broadcast %26 : vector<1x32xf32> to vector<32x32xf32>
    %135 = arith.mulf %133, %134 : vector<32x32xf32>
    %136 = vector.broadcast %27 : vector<1x32xf32> to vector<32x32xf32>
    %137 = arith.addf %135, %136 : vector<32x32xf32>
    %c1_49 = arith.constant 1 : index
    %c0_50 = arith.constant 0 : index
    %c0_51 = arith.constant 0 : index
    %138 = vector.load %arg4[%c1_49, %c0_50, %c0_51] : memref<2x32x96xf32, #tpu.memory_space<vmem>>, vector<1x32x96xf32>
    %139 = vector.shape_cast %138 : vector<1x32x96xf32> to vector<32x96xf32>
    %c1_52 = arith.constant 1 : index
    %c0_53 = arith.constant 0 : index
    %c0_54 = arith.constant 0 : index
    %140 = vector.load %arg5[%c1_52, %c0_53, %c0_54] : memref<2x32x32xf32, #tpu.memory_space<vmem>>, vector<1x32x32xf32>
    %141 = vector.shape_cast %140 : vector<1x32x32xf32> to vector<32x32xf32>
    %c1_55 = arith.constant 1 : index
    %c0_56 = arith.constant 0 : index
    %c0_57 = arith.constant 0 : index
    %142 = vector.load %arg6[%c1_55, %c0_56, %c0_57] : memref<2x32x64xf32, #tpu.memory_space<vmem>>, vector<1x32x64xf32>
    %143 = vector.shape_cast %142 : vector<1x32x64xf32> to vector<32x64xf32>
    %c1_58 = arith.constant 1 : index
    %c0_59 = arith.constant 0 : index
    %c0_60 = arith.constant 0 : index
    %144 = vector.load %arg7[%c1_58, %c0_59, %c0_60] : memref<2x64x32xf32, #tpu.memory_space<vmem>>, vector<1x64x32xf32>
    %145 = vector.shape_cast %144 : vector<1x64x32xf32> to vector<64x32xf32>
    %c10 = arith.constant 10 : index
    %c0_61 = arith.constant 0 : index
    %146 = vector.load %arg8[%c10, %c0_61] : memref<18x128xf32, #tpu.memory_space<vmem>>, vector<1x96xf32>
    %c11 = arith.constant 11 : index
    %c0_62 = arith.constant 0 : index
    %147 = vector.load %arg8[%c11, %c0_62] : memref<18x128xf32, #tpu.memory_space<vmem>>, vector<1x32xf32>
    %c12 = arith.constant 12 : index
    %c0_63 = arith.constant 0 : index
    %148 = vector.load %arg8[%c12, %c0_63] : memref<18x128xf32, #tpu.memory_space<vmem>>, vector<1x32xf32>
    %c13 = arith.constant 13 : index
    %c0_64 = arith.constant 0 : index
    %149 = vector.load %arg8[%c13, %c0_64] : memref<18x128xf32, #tpu.memory_space<vmem>>, vector<1x32xf32>
    %c14 = arith.constant 14 : index
    %c0_65 = arith.constant 0 : index
    %150 = vector.load %arg8[%c14, %c0_65] : memref<18x128xf32, #tpu.memory_space<vmem>>, vector<1x64xf32>
    %c15 = arith.constant 15 : index
    %c0_66 = arith.constant 0 : index
    %151 = vector.load %arg8[%c15, %c0_66] : memref<18x128xf32, #tpu.memory_space<vmem>>, vector<1x32xf32>
    %c16 = arith.constant 16 : index
    %c0_67 = arith.constant 0 : index
    %152 = vector.load %arg8[%c16, %c0_67] : memref<18x128xf32, #tpu.memory_space<vmem>>, vector<1x32xf32>
    %c17 = arith.constant 17 : index
    %c0_68 = arith.constant 0 : index
    %153 = vector.load %arg8[%c17, %c0_68] : memref<18x128xf32, #tpu.memory_space<vmem>>, vector<1x32xf32>
    %cst_69 = arith.constant dense<0.000000e+00> : vector<32x96xf32>
    %154 = tpu.matmul %137, %139, %cst_69 {dimension_numbers = #tpu.dot_dimension_numbers<[1], [0], [0], [1], [0, 0, 1, 1], [], []>} : vector<32x32xf32>, vector<32x96xf32>, vector<32x96xf32> -> vector<32x96xf32>
    %155 = vector.broadcast %146 : vector<1x96xf32> to vector<32x96xf32>
    %156 = arith.addf %154, %155 : vector<32x96xf32>
    %157 = vector.extract_strided_slice %156 {offsets = [0, 0], sizes = [32, 32], strides = [1, 1]} : vector<32x96xf32> to vector<32x32xf32>
    %158 = vector.extract_strided_slice %156 {offsets = [0, 32], sizes = [32, 32], strides = [1, 1]} : vector<32x96xf32> to vector<32x32xf32>
    %159 = vector.extract_strided_slice %156 {offsets = [0, 64], sizes = [32, 32], strides = [1, 1]} : vector<32x96xf32> to vector<32x32xf32>
    %160 = vector.extract_strided_slice %157 {offsets = [0, 0], sizes = [16, 32], strides = [1, 1]} : vector<32x32xf32> to vector<16x32xf32>
    %161 = vector.extract_strided_slice %157 {offsets = [16, 0], sizes = [16, 32], strides = [1, 1]} : vector<32x32xf32> to vector<16x32xf32>
    %162 = vector.extract_strided_slice %158 {offsets = [0, 0], sizes = [16, 32], strides = [1, 1]} : vector<32x32xf32> to vector<16x32xf32>
    %163 = vector.extract_strided_slice %158 {offsets = [16, 0], sizes = [16, 32], strides = [1, 1]} : vector<32x32xf32> to vector<16x32xf32>
    %164 = vector.extract_strided_slice %159 {offsets = [0, 0], sizes = [16, 32], strides = [1, 1]} : vector<32x32xf32> to vector<16x32xf32>
    %165 = vector.extract_strided_slice %159 {offsets = [16, 0], sizes = [16, 32], strides = [1, 1]} : vector<32x32xf32> to vector<16x32xf32>
    %166 = arith.mulf %160, %162 : vector<16x32xf32>
    %167 = arith.mulf %160, %163 : vector<16x32xf32>
    %168 = arith.mulf %161, %162 : vector<16x32xf32>
    %169 = arith.mulf %161, %163 : vector<16x32xf32>
    %170 = tpu.concatenate %166, %167, %168, %169 in 0 : vector<16x32xf32>, vector<16x32xf32>, vector<16x32xf32>, vector<16x32xf32> -> vector<64x32xf32>
    %cst_70 = arith.constant dense<0.000000e+00> : vector<64x4xf32>
    %171 = tpu.matmul %170, %2, %cst_70 {dimension_numbers = #tpu.dot_dimension_numbers<[1], [0], [0], [1], [0, 0, 1, 1], [], []>} : vector<64x32xf32>, vector<32x4xf32>, vector<64x4xf32> -> vector<64x4xf32>
    %172 = vector.extract_strided_slice %171 {offsets = [0, 0], sizes = [16, 4], strides = [1, 1]} : vector<64x4xf32> to vector<16x4xf32>
    %173 = vector.extract_strided_slice %171 {offsets = [16, 0], sizes = [16, 4], strides = [1, 1]} : vector<64x4xf32> to vector<16x4xf32>
    %174 = arith.maximumf %172, %173 : vector<16x4xf32>
    %175 = arith.subf %172, %174 : vector<16x4xf32>
    %176 = math.exp %175 : vector<16x4xf32>
    %177 = arith.subf %173, %174 : vector<16x4xf32>
    %178 = math.exp %177 : vector<16x4xf32>
    %179 = arith.addf %176, %178 : vector<16x4xf32>
    %180 = tpu.reciprocal %179 {approx = true} : vector<16x4xf32> -> vector<16x4xf32>
    %181 = arith.mulf %176, %180 : vector<16x4xf32>
    %182 = arith.mulf %178, %180 : vector<16x4xf32>
    %183 = vector.extract_strided_slice %171 {offsets = [32, 0], sizes = [16, 4], strides = [1, 1]} : vector<64x4xf32> to vector<16x4xf32>
    %184 = vector.extract_strided_slice %171 {offsets = [48, 0], sizes = [16, 4], strides = [1, 1]} : vector<64x4xf32> to vector<16x4xf32>
    %185 = arith.maximumf %183, %184 : vector<16x4xf32>
    %186 = arith.subf %183, %185 : vector<16x4xf32>
    %187 = math.exp %186 : vector<16x4xf32>
    %188 = arith.subf %184, %185 : vector<16x4xf32>
    %189 = math.exp %188 : vector<16x4xf32>
    %190 = arith.addf %187, %189 : vector<16x4xf32>
    %191 = tpu.reciprocal %190 {approx = true} : vector<16x4xf32> -> vector<16x4xf32>
    %192 = arith.mulf %187, %191 : vector<16x4xf32>
    %193 = arith.mulf %189, %191 : vector<16x4xf32>
    %194 = tpu.concatenate %181, %182, %192, %193 in 0 : vector<16x4xf32>, vector<16x4xf32>, vector<16x4xf32>, vector<16x4xf32> -> vector<64x4xf32>
    %cst_71 = arith.constant dense<0.000000e+00> : vector<64x32xf32>
    %195 = tpu.matmul %194, %3, %cst_71 {dimension_numbers = #tpu.dot_dimension_numbers<[1], [0], [0], [1], [0, 0, 1, 1], [], []>} : vector<64x4xf32>, vector<4x32xf32>, vector<64x32xf32> -> vector<64x32xf32>
    %196 = vector.extract_strided_slice %195 {offsets = [0, 0], sizes = [16, 32], strides = [1, 1]} : vector<64x32xf32> to vector<16x32xf32>
    %197 = arith.mulf %196, %164 : vector<16x32xf32>
    %198 = vector.extract_strided_slice %195 {offsets = [16, 0], sizes = [16, 32], strides = [1, 1]} : vector<64x32xf32> to vector<16x32xf32>
    %199 = arith.mulf %198, %165 : vector<16x32xf32>
    %200 = arith.addf %197, %199 : vector<16x32xf32>
    %201 = vector.extract_strided_slice %195 {offsets = [32, 0], sizes = [16, 32], strides = [1, 1]} : vector<64x32xf32> to vector<16x32xf32>
    %202 = arith.mulf %201, %164 : vector<16x32xf32>
    %203 = vector.extract_strided_slice %195 {offsets = [48, 0], sizes = [16, 32], strides = [1, 1]} : vector<64x32xf32> to vector<16x32xf32>
    %204 = arith.mulf %203, %165 : vector<16x32xf32>
    %205 = arith.addf %202, %204 : vector<16x32xf32>
    %206 = tpu.concatenate %200, %205 in 0 : vector<16x32xf32>, vector<16x32xf32> -> vector<32x32xf32>
    %cst_72 = arith.constant dense<0.000000e+00> : vector<32x32xf32>
    %207 = tpu.matmul %206, %141, %cst_72 {dimension_numbers = #tpu.dot_dimension_numbers<[1], [0], [0], [1], [0, 0, 1, 1], [], []>} : vector<32x32xf32>, vector<32x32xf32>, vector<32x32xf32> -> vector<32x32xf32>
    %208 = vector.broadcast %147 : vector<1x32xf32> to vector<32x32xf32>
    %209 = arith.addf %207, %208 : vector<32x32xf32>
    %210 = arith.addf %137, %209 : vector<32x32xf32>
    %cst_73 = arith.constant dense<0.000000e+00> : vector<32xf32>
    %211 = vector.multi_reduction <add>, %210, %cst_73 [1] : vector<32x32xf32> to vector<32xf32>
    %212 = vector.shape_cast %211 : vector<32xf32> to vector<32x1xf32>
    %cst_74 = arith.constant 3.200000e+01 : f32
    %213 = vector.broadcast %cst_74 : f32 to vector<32x1xf32>
    %214 = arith.divf %212, %213 : vector<32x1xf32>
    %215 = vector.broadcast %214 : vector<32x1xf32> to vector<32x32xf32>
    %216 = arith.subf %210, %215 : vector<32x32xf32>
    %217 = arith.mulf %216, %216 : vector<32x32xf32>
    %cst_75 = arith.constant dense<0.000000e+00> : vector<32xf32>
    %218 = vector.multi_reduction <add>, %217, %cst_75 [1] : vector<32x32xf32> to vector<32xf32>
    %219 = vector.shape_cast %218 : vector<32xf32> to vector<32x1xf32>
    %cst_76 = arith.constant 3.200000e+01 : f32
    %220 = vector.broadcast %cst_76 : f32 to vector<32x1xf32>
    %221 = arith.divf %219, %220 : vector<32x1xf32>
    %222 = vector.broadcast %214 : vector<32x1xf32> to vector<32x32xf32>
    %223 = arith.subf %210, %222 : vector<32x32xf32>
    %cst_77 = arith.constant 9.99999974E-6 : f32
    %224 = vector.broadcast %cst_77 : f32 to vector<32x1xf32>
    %225 = arith.addf %221, %224 : vector<32x1xf32>
    %226 = math.rsqrt %225 : vector<32x1xf32>
    %227 = vector.broadcast %226 : vector<32x1xf32> to vector<32x32xf32>
    %228 = arith.mulf %223, %227 : vector<32x32xf32>
    %229 = vector.broadcast %148 : vector<1x32xf32> to vector<32x32xf32>
    %230 = arith.mulf %228, %229 : vector<32x32xf32>
    %231 = vector.broadcast %149 : vector<1x32xf32> to vector<32x32xf32>
    %232 = arith.addf %230, %231 : vector<32x32xf32>
    %cst_78 = arith.constant dense<0.000000e+00> : vector<32x64xf32>
    %233 = tpu.matmul %232, %143, %cst_78 {dimension_numbers = #tpu.dot_dimension_numbers<[1], [0], [0], [1], [0, 0, 1, 1], [], []>} : vector<32x32xf32>, vector<32x64xf32>, vector<32x64xf32> -> vector<32x64xf32>
    %234 = vector.broadcast %150 : vector<1x64xf32> to vector<32x64xf32>
    %235 = arith.addf %233, %234 : vector<32x64xf32>
    %cst_79 = arith.constant 0.000000e+00 : f32
    %236 = vector.broadcast %cst_79 : f32 to vector<32x64xf32>
    %237 = arith.maximumf %235, %236 : vector<32x64xf32>
    %cst_80 = arith.constant dense<0.000000e+00> : vector<32x32xf32>
    %238 = tpu.matmul %237, %145, %cst_80 {dimension_numbers = #tpu.dot_dimension_numbers<[1], [0], [0], [1], [0, 0, 1, 1], [], []>} : vector<32x64xf32>, vector<64x32xf32>, vector<32x32xf32> -> vector<32x32xf32>
    %239 = vector.broadcast %151 : vector<1x32xf32> to vector<32x32xf32>
    %240 = arith.addf %238, %239 : vector<32x32xf32>
    %241 = arith.addf %232, %240 : vector<32x32xf32>
    %cst_81 = arith.constant dense<0.000000e+00> : vector<32xf32>
    %242 = vector.multi_reduction <add>, %241, %cst_81 [1] : vector<32x32xf32> to vector<32xf32>
    %243 = vector.shape_cast %242 : vector<32xf32> to vector<32x1xf32>
    %cst_82 = arith.constant 3.200000e+01 : f32
    %244 = vector.broadcast %cst_82 : f32 to vector<32x1xf32>
    %245 = arith.divf %243, %244 : vector<32x1xf32>
    %246 = vector.broadcast %245 : vector<32x1xf32> to vector<32x32xf32>
    %247 = arith.subf %241, %246 : vector<32x32xf32>
    %248 = arith.mulf %247, %247 : vector<32x32xf32>
    %cst_83 = arith.constant dense<0.000000e+00> : vector<32xf32>
    %249 = vector.multi_reduction <add>, %248, %cst_83 [1] : vector<32x32xf32> to vector<32xf32>
    %250 = vector.shape_cast %249 : vector<32xf32> to vector<32x1xf32>
    %cst_84 = arith.constant 3.200000e+01 : f32
    %251 = vector.broadcast %cst_84 : f32 to vector<32x1xf32>
    %252 = arith.divf %250, %251 : vector<32x1xf32>
    %253 = vector.broadcast %245 : vector<32x1xf32> to vector<32x32xf32>
    %254 = arith.subf %241, %253 : vector<32x32xf32>
    %cst_85 = arith.constant 9.99999974E-6 : f32
    %255 = vector.broadcast %cst_85 : f32 to vector<32x1xf32>
    %256 = arith.addf %252, %255 : vector<32x1xf32>
    %257 = math.rsqrt %256 : vector<32x1xf32>
    %258 = vector.broadcast %257 : vector<32x1xf32> to vector<32x32xf32>
    %259 = arith.mulf %254, %258 : vector<32x32xf32>
    %260 = vector.broadcast %152 : vector<1x32xf32> to vector<32x32xf32>
    %261 = arith.mulf %259, %260 : vector<32x32xf32>
    %262 = vector.broadcast %153 : vector<1x32xf32> to vector<32x32xf32>
    %263 = arith.addf %261, %262 : vector<32x32xf32>
    %c0_86 = arith.constant 0 : index
    %c0_87 = arith.constant 0 : index
    %264 = vector.load %arg3[%c0_86, %c0_87] : memref<32x128xf32, #tpu.memory_space<vmem>>, vector<32x128xf32>
    %cst_88 = arith.constant dense<0.000000e+00> : vector<32x128xf32>
    %265 = tpu.matmul %263, %264, %cst_88 {dimension_numbers = #tpu.dot_dimension_numbers<[1], [0], [0], [1], [0, 0, 1, 1], [], []>} : vector<32x32xf32>, vector<32x128xf32>, vector<32x128xf32> -> vector<32x128xf32>
    %266 = vector.broadcast %1 : vector<1x128xf32> to vector<32x128xf32>
    %267 = arith.addf %265, %266 : vector<32x128xf32>
    %268 = arith.negf %267 : vector<32x128xf32>
    %269 = math.exp %268 : vector<32x128xf32>
    %cst_89 = arith.constant 1.000000e+00 : f32
    %270 = vector.broadcast %cst_89 : f32 to vector<32x128xf32>
    %271 = arith.addf %270, %269 : vector<32x128xf32>
    %272 = arith.divf %270, %271 : vector<32x128xf32>
    %c0_90 = arith.constant 0 : index
    %c0_91 = arith.constant 0 : index
    %273 = vector.load %arg11[%c0_90, %c0_91] : memref<32x128xf32, #tpu.memory_space<vmem>>, vector<32x128xf32>
    tpu.vector_store %arg11[%c0_90, %c0_91], %272 {strides = array<i32>} : memref<32x128xf32, #tpu.memory_space<vmem>>, vector<32x128xf32>,
    return
  }
}

</mosaic_0001>

<llo_original>
// kernel: generator_forward.1
$region0: #{generator_forward.1}
  #allocation0 [shape = 'u32[]', space=smem, size = 0x4, offset = 0x4, fixed_abs, tag = 'smem constant byte address 0x4 - core index']
  #allocation1 [shape = 'u32[72,128]{1,0:T(1,128)}', space=vmem, size = 0x9000, scoped, tag = 'internal scratch']
  %s0 = inlined_call_operand.vmem [shape: f32[32,48], index: 0, kind: input, shape index: {}]
  %s1 = inlined_call_operand.vmem [shape: f32[16,32], index: 1, kind: input, shape index: {}]
  %s2 = inlined_call_operand.vmem [shape: f32[48,32], index: 2, kind: input, shape index: {}]
  %s3 = inlined_call_operand.vmem [shape: f32[32,128], index: 3, kind: input, shape index: {}]
  %s4 = inlined_call_operand.vmem [shape: f32[2,32,96], index: 4, kind: input, shape index: {}]
  %s5 = inlined_call_operand.vmem [shape: f32[2,32,32], index: 5, kind: input, shape index: {}]
  %s6 = inlined_call_operand.vmem [shape: f32[2,32,64], index: 6, kind: input, shape index: {}]
  %s7 = inlined_call_operand.vmem [shape: f32[2,64,32], index: 7, kind: input, shape index: {}]
  %s8 = inlined_call_operand.vmem [shape: f32[18,128], index: 8, kind: input, shape index: {}]
  %s9 = inlined_call_operand.vmem [shape: f32[32,4], index: 9, kind: input, shape index: {}]
  %s10 = inlined_call_operand.vmem [shape: f32[4,32], index: 10, kind: input, shape index: {}]
  %s11 = inlined_call_operand.vmem [shape: f32[32,128], index: 11, kind: output, shape index: {}]
  %s12 = sld [smem:[#allocation0]]
  $region54: #{generator_forward.1} parent=0
    _
  %s14 = ssub.s32 1, %s12
  %s15 = scalar_select 0, %s14, %s12
  // Predicated region
  $region2: #{generator_forward.1} parent=0 // pred_check
    _
  $region3: #{generator_forward.1} parent=0 // pred_check_branch
    %17 = sbr.rel (0) target = $region5
  $region4: #{generator_forward.1} parent=0 // pred_region
    _
  $region5: #{generator_forward.1} parent=0 // pred_fallthru
    _
  // Predicated region
  $region6: #{generator_forward.1} parent=0 // pred_check
    _
  $region7: #{generator_forward.1} parent=0 // pred_check_branch
    %19 = sbr.rel (0) target = $region9
  $region8: #{generator_forward.1} parent=0 // pred_region
    _
  $region9: #{generator_forward.1} parent=0 // pred_fallthru
    _
  // Predicated region
  $region10: #{generator_forward.1} parent=0 // pred_check
    _
  $region11: #{generator_forward.1} parent=0 // pred_check_branch
    %21 = sbr.rel (0) target = $region13
  $region12: #{generator_forward.1} parent=0 // pred_region
    _
  $region13: #{generator_forward.1} parent=0 // pred_fallthru
    _
  // Predicated region
  $region14: #{generator_forward.1} parent=0 // pred_check
    _
  $region15: #{generator_forward.1} parent=0 // pred_check_branch
    %23 = sbr.rel (0) target = $region17
  $region16: #{generator_forward.1} parent=0 // pred_region
    _
  $region17: #{generator_forward.1} parent=0 // pred_fallthru
    _
  // Predicated region
  $region18: #{generator_forward.1} parent=0 // pred_check
    _
  $region19: #{generator_forward.1} parent=0 // pred_check_branch
    %25 = sbr.rel (0) target = $region21
  $region20: #{generator_forward.1} parent=0 // pred_region
    _
  $region21: #{generator_forward.1} parent=0 // pred_fallthru
    _
  // Predicated region
  $region22: #{generator_forward.1} parent=0 // pred_check
    _
  $region23: #{generator_forward.1} parent=0 // pred_check_branch
    %27 = sbr.rel (0) target = $region25
  $region24: #{generator_forward.1} parent=0 // pred_region
    _
  $region25: #{generator_forward.1} parent=0 // pred_fallthru
    _
  // Predicated region
  $region26: #{generator_forward.1} parent=0 // pred_check
    _
  $region27: #{generator_forward.1} parent=0 // pred_check_branch
    %29 = sbr.rel (0) target = $region29
  $region28: #{generator_forward.1} parent=0 // pred_region
    _
  $region29: #{generator_forward.1} parent=0 // pred_fallthru
    _
  // Predicated region
  $region30: #{generator_forward.1} parent=0 // pred_check
    _
  $region31: #{generator_forward.1} parent=0 // pred_check_branch
    %31 = sbr.rel (0) target = $region33
  $region32: #{generator_forward.1} parent=0 // pred_region
    _
  $region33: #{generator_forward.1} parent=0 // pred_fallthru
    _
  // Predicated region
  $region34: #{generator_forward.1} parent=0 // pred_check
    _
  $region35: #{generator_forward.1} parent=0 // pred_check_branch
    %33 = sbr.rel (0) target = $region37
  $region36: #{generator_forward.1} parent=0 // pred_region
    _
  $region37: #{generator_forward.1} parent=0 // pred_fallthru
    _
  // Predicated region
  $region38: #{generator_forward.1} parent=0 // pred_check
    _
  $region39: #{generator_forward.1} parent=0 // pred_check_branch
    %35 = sbr.rel (0) target = $region41
  $region40: #{generator_forward.1} parent=0 // pred_region
    _
  $region41: #{generator_forward.1} parent=0 // pred_fallthru
    _
  // Predicated region
  $region42: #{generator_forward.1} parent=0 // pred_check
    _
  $region43: #{generator_forward.1} parent=0 // pred_check_branch
    %37 = sbr.rel (0) target = $region45
  $region44: #{generator_forward.1} parent=0 // pred_region
    _
  $region45: #{generator_forward.1} parent=0 // pred_fallthru
    _
  %v38 = vld [vmem:[%s8] sm:$0x1]
  %v39 = vld [vmem:[%s8 + $0x1] sm:$0x1]
  %v40 = vld [vmem:[%s9] sm:$0xff]
  %v41 = vld [vmem:[%s9 + $0x8] sm:$0xff]
  %v42 = vld [vmem:[%s9 + $0x10] sm:$0xff]
  %v43 = vld [vmem:[%s9 + $0x18] sm:$0xff]
  %v44 = vld [vmem:[%s10] sm:$0xf]
  %v45 = vld [vmem:[%s0] sm:$0xff]
  %v46 = vld [vmem:[%s0 + $0x8] sm:$0xff]
  %v47 = vld [vmem:[%s0 + $0x10] sm:$0xff]
  %v48 = vld [vmem:[%s0 + $0x18] sm:$0xff]
  %v49 = vld [vmem:[%s2] sm:$0xff]
  %v50 = vld [vmem:[%s2 + $0x8] sm:$0xff]
  %v51 = vld [vmem:[%s2 + $0x10] sm:$0xff]
  %v52 = vld [vmem:[%s2 + $0x18] sm:$0xff]
  %v53 = vld [vmem:[%s2 + $0x20] sm:$0xff]
  %v54 = vld [vmem:[%s2 + $0x28] sm:$0xff]
  %v55 = vperm.slane %v38, 0
  %vm56 = vcmask 392192
  %v58 = vsel %vm56, %v45, 0
  %v61 = vsel %vm56, %v46, 0
  %v64 = vsel %vm56, %v47, 0
  %v67 = vsel %vm56, %v48, 0
  %69 = vmatpush.msra.mxu0 0.0
  %70 = vmatpush.msra.mxu0 0.0
  %71 = vmatpush.msra.mxu0 0.0
  %72 = vmatpush.msra.mxu0 0.0
  %73 = vmatpush.msra.mxu0 0.0
  %74 = vmatpush.msra.mxu0 0.0
  %75 = vmatpush.msra.mxu0 0.0
  %76 = vmatpush.msra.mxu0 0.0
  %77 = vmatpush.msra.mxu0 0.0
  %78 = vmatpush.msra.mxu0 0.0
  %79 = vmatpush.msra.mxu0 %v54
  %80 = vmatpush.msra.mxu0 %v53
  %81 = vmatpush.msra.mxu0 %v52
  %82 = vmatpush.msra.mxu0 %v51
  %83 = vmatpush.msra.mxu0 %v50
  %84 = vmatpush.msra.mxu0 %v49
  %85 = vmatmul.f32.gmra.mxu0 %v58
  %v86 = vpop.f32.mrf.mxu0
  %v87 = vadd.f32 %v55, %v86
  %88 = vmatmul.f32.gmra.mxu0 %v61
  %v89 = vpop.f32.mrf.mxu0
  %v90 = vadd.f32 %v55, %v89
  %91 = vmatmul.f32.gmra.mxu0 %v64
  %v92 = vpop.f32.mrf.mxu0
  %v93 = vadd.f32 %v55, %v92
  %94 = vmatmul.f32.gmra.mxu0 %v67
  %v95 = vpop.f32.mrf.mxu0
  %v96 = vadd.f32 %v55, %v95
  %97 = vdwg.mxu0
  %v98 = vld [vmem:[%s1] sm:$0xff]
  %v99 = vld [vmem:[%s1 + $0x8] sm:$0xff]
  %v100 = vadd.f32 %v87, %v98
  %v101 = vadd.f32 %v90, %v99
  %v102 = vadd.f32 %v93, %v98
  %v103 = vadd.f32 %v96, %v99
  %v104 = vld [vmem:[%s4] sm:$0xff]
  %v105 = vld [vmem:[%s4 + $0x8] sm:$0xff]
  %v106 = vld [vmem:[%s4 + $0x10] sm:$0xff]
  %v107 = vld [vmem:[%s4 + $0x18] sm:$0xff]
  %v108 = vld [vmem:[%s5] sm:$0xff]
  %v109 = vld [vmem:[%s5 + $0x8] sm:$0xff]
  %v110 = vld [vmem:[%s5 + $0x10] sm:$0xff]
  %v111 = vld [vmem:[%s5 + $0x18] sm:$0xff]
  %v112 = vld [vmem:[%s6] sm:$0xff]
  %v113 = vld [vmem:[%s6 + $0x8] sm:$0xff]
  %v114 = vld [vmem:[%s6 + $0x10] sm:$0xff]
  %v115 = vld [vmem:[%s6 + $0x18] sm:$0xff]
  %v116 = vld [vmem:[%s7] sm:$0xff]
  %v117 = vld [vmem:[%s7 + $0x8] sm:$0xff]
  %v118 = vld [vmem:[%s7 + $0x10] sm:$0xff]
  %v119 = vld [vmem:[%s7 + $0x18] sm:$0xff]
  %v120 = vld [vmem:[%s7 + $0x20] sm:$0xff]
  %v121 = vld [vmem:[%s7 + $0x28] sm:$0xff]
  %v122 = vld [vmem:[%s7 + $0x30] sm:$0xff]
  %v123 = vld [vmem:[%s7 + $0x38] sm:$0xff]
  %v124 = vld [vmem:[%s8 + $0x2] sm:$0x1]
  %v125 = vld [vmem:[%s8 + $0x3] sm:$0x1]
  %v126 = vld [vmem:[%s8 + $0x4] sm:$0x1]
  %v127 = vld [vmem:[%s8 + $0x5] sm:$0x1]
  %v128 = vld [vmem:[%s8 + $0x6] sm:$0x1]
  %v129 = vld [vmem:[%s8 + $0x7] sm:$0x1]
  %v130 = vld [vmem:[%s8 + $0x8] sm:$0x1]
  %v131 = vld [vmem:[%s8 + $0x9] sm:$0x1]
  %v132 = vperm.slane %v124, 0
  %vm133 = vcmask 261120
  %v135 = vsel %vm133, %v100, 0
  %v138 = vsel %vm133, %v101, 0
  %v141 = vsel %vm133, %v102, 0
  %v144 = vsel %vm133, %v103, 0
  %146 = vmatpush.msra.mxu0 0.0
  %147 = vmatpush.msra.mxu0 0.0
  %148 = vmatpush.msra.mxu0 0.0
  %149 = vmatpush.msra.mxu0 0.0
  %150 = vmatpush.msra.mxu0 0.0
  %151 = vmatpush.msra.mxu0 0.0
  %152 = vmatpush.msra.mxu0 0.0
  %153 = vmatpush.msra.mxu0 0.0
  %154 = vmatpush.msra.mxu0 0.0
  %155 = vmatpush.msra.mxu0 0.0
  %156 = vmatpush.msra.mxu0 0.0
  %157 = vmatpush.msra.mxu0 0.0
  %158 = vmatpush.msra.mxu0 %v107
  %159 = vmatpush.msra.mxu0 %v106
  %160 = vmatpush.msra.mxu0 %v105
  %161 = vmatpush.msra.mxu0 %v104
  %162 = vmatmul.f32.gmra.mxu0 %v135
  %v163 = vpop.f32.mrf.mxu0
  %v164 = vadd.f32 %v132, %v163
  %165 = vmatmul.f32.gmra.mxu0 %v138
  %v166 = vpop.f32.mrf.mxu0
  %v167 = vadd.f32 %v132, %v166
  %168 = vmatmul.f32.gmra.mxu0 %v141
  %v169 = vpop.f32.mrf.mxu0
  %v170 = vadd.f32 %v132, %v169
  %171 = vmatmul.f32.gmra.mxu0 %v144
  %v172 = vpop.f32.mrf.mxu0
  %v173 = vadd.f32 %v132, %v172
  %174 = vdwg.mxu0
  %177 = vrot.lane.b32.xlu0 %v164, 96
  %v178 = vpop.permute.xlu0 %177
  %179 = vrot.lane.b32.xlu0 %v167, 96
  %v180 = vpop.permute.xlu0 %179
  %v183 = vmul.f32 %v164, %v178
  %v184 = vmul.f32 %v167, %v180
  %187 = vrot.lane.b32.xlu0 %v170, 96
  %v188 = vpop.permute.xlu0 %187
  %189 = vrot.lane.b32.xlu0 %v173, 96
  %v190 = vpop.permute.xlu0 %189
  %v193 = vmul.f32 %v164, %v188
  %v194 = vmul.f32 %v167, %v190
  %v195 = vmul.f32 %v170, %v178
  %v196 = vmul.f32 %v173, %v180
  %v197 = vmul.f32 %v170, %v188
  %v198 = vmul.f32 %v173, %v190
  %v200 = vsel %vm133, %v183, 0
  %v203 = vsel %vm133, %v184, 0
  %v206 = vsel %vm133, %v193, 0
  %v209 = vsel %vm133, %v194, 0
  %v212 = vsel %vm133, %v195, 0
  %v215 = vsel %vm133, %v196, 0
  %v218 = vsel %vm133, %v197, 0
  %v221 = vsel %vm133, %v198, 0
  %223 = vmatpush.msra.mxu0 0.0
  %224 = vmatpush.msra.mxu0 0.0
  %225 = vmatpush.msra.mxu0 0.0
  %226 = vmatpush.msra.mxu0 0.0
  %227 = vmatpush.msra.mxu0 0.0
  %228 = vmatpush.msra.mxu0 0.0
  %229 = vmatpush.msra.mxu0 0.0
  %230 = vmatpush.msra.mxu0 0.0
  %231 = vmatpush.msra.mxu0 0.0
  %232 = vmatpush.msra.mxu0 0.0
  %233 = vmatpush.msra.mxu0 0.0
  %234 = vmatpush.msra.mxu0 0.0
  %235 = vmatpush.msra.mxu0 %v43
  %236 = vmatpush.msra.mxu0 %v42
  %237 = vmatpush.msra.mxu0 %v41
  %238 = vmatpush.msra.mxu0 %v40
  %239 = vmatmul.f32.gmra.mxu0 %v200
  %v240 = vpop.f32.mrf.mxu0
  %v241 = vadd.f32 0.0, %v240
  %242 = vmatmul.f32.gmra.mxu0 %v203
  %v243 = vpop.f32.mrf.mxu0
  %v244 = vadd.f32 0.0, %v243
  %245 = vmatmul.f32.gmra.mxu0 %v206
  %v246 = vpop.f32.mrf.mxu0
  %v247 = vadd.f32 0.0, %v246
  %248 = vmatmul.f32.gmra.mxu0 %v209
  %v249 = vpop.f32.mrf.mxu0
  %v250 = vadd.f32 0.0, %v249
  %251 = vmatmul.f32.gmra.mxu0 %v212
  %v252 = vpop.f32.mrf.mxu0
  %v253 = vadd.f32 0.0, %v252
  %254 = vmatmul.f32.gmra.mxu0 %v215
  %v255 = vpop.f32.mrf.mxu0
  %v256 = vadd.f32 0.0, %v255
  %257 = vmatmul.f32.gmra.mxu0 %v218
  %v258 = vpop.f32.mrf.mxu0
  %v259 = vadd.f32 0.0, %v258
  %260 = vmatmul.f32.gmra.mxu0 %v221
  %v261 = vpop.f32.mrf.mxu0
  %v262 = vadd.f32 0.0, %v261
  %263 = vdwg.mxu0
  %v264 = vmax.f32 %v241, %v247
  %v265 = vmax.f32 %v244, %v250
  %v266 = vsub.f32 %v241, %v264
  %v267 = vsub.f32 %v244, %v265
  %v268 = vmul.f32 %v266, 1.442695
  %v269 = vpow.pop %v268
  %v270 = vmul.f32 %v267, 1.442695
  %v271 = vpow.pop %v270
  %v272 = vsub.f32 %v247, %v264
  %v273 = vsub.f32 %v250, %v265
  %v274 = vmul.f32 %v272, 1.442695
  %v275 = vpow.pop %v274
  %v276 = vmul.f32 %v273, 1.442695
  %v277 = vpow.pop %v276
  %v278 = vadd.f32 %v269, %v275
  %v279 = vadd.f32 %v271, %v277
  %v280 = vrcp.pop %v278
  %v281 = vrcp.pop %v279
  %v282 = vmul.f32 %v269, %v280
  %v283 = vmul.f32 %v271, %v281
  %v284 = vmul.f32 %v275, %v280
  %v285 = vmul.f32 %v277, %v281
  %v286 = vmax.f32 %v253, %v259
  %v287 = vmax.f32 %v256, %v262
  %v288 = vsub.f32 %v253, %v286
  %v289 = vsub.f32 %v256, %v287
  %v290 = vmul.f32 %v288, 1.442695
  %v291 = vpow.pop %v290
  %v292 = vmul.f32 %v289, 1.442695
  %v293 = vpow.pop %v292
  %v294 = vsub.f32 %v259, %v286
  %v295 = vsub.f32 %v262, %v287
  %v296 = vmul.f32 %v294, 1.442695
  %v297 = vpow.pop %v296
  %v298 = vmul.f32 %v295, 1.442695
  %v299 = vpow.pop %v298
  %v300 = vadd.f32 %v291, %v297
  %v301 = vadd.f32 %v293, %v299
  %v302 = vrcp.pop %v300
  %v303 = vrcp.pop %v301
  %v304 = vmul.f32 %v291, %v302
  %v305 = vmul.f32 %v293, %v303
  %v306 = vmul.f32 %v297, %v302
  %v307 = vmul.f32 %v299, %v303
  %vm308 = vcmask 31744
  %v310 = vsel %vm308, %v282, 0
  %v313 = vsel %vm308, %v283, 0
  %v316 = vsel %vm308, %v284, 0
  %v319 = vsel %vm308, %v285, 0
  %v322 = vsel %vm308, %v304, 0
  %v325 = vsel %vm308, %v305, 0
  %v328 = vsel %vm308, %v306, 0
  %v331 = vsel %vm308, %v307, 0
  %vm333 = vcmask 1043456
  %v335 = vsel %vm333, %v44, 0
  %337 = vmatpush.msra.mxu0 0.0
  %338 = vmatpush.msra.mxu0 0.0
  %339 = vmatpush.msra.mxu0 0.0
  %340 = vmatpush.msra.mxu0 0.0
  %341 = vmatpush.msra.mxu0 0.0
  %342 = vmatpush.msra.mxu0 0.0
  %343 = vmatpush.msra.mxu0 0.0
  %344 = vmatpush.msra.mxu0 0.0
  %345 = vmatpush.msra.mxu0 0.0
  %346 = vmatpush.msra.mxu0 0.0
  %347 = vmatpush.msra.mxu0 0.0
  %348 = vmatpush.msra.mxu0 0.0
  %349 = vmatpush.msra.mxu0 0.0
  %350 = vmatpush.msra.mxu0 0.0
  %351 = vmatpush.msra.mxu0 0.0
  %352 = vmatpush.msra.mxu0 %v335
  %353 = vmatmul.f32.gmra.mxu0 %v310
  %v354 = vpop.f32.mrf.mxu0
  %v355 = vadd.f32 0.0, %v354
  %356 = vmatmul.f32.gmra.mxu0 %v313
  %v357 = vpop.f32.mrf.mxu0
  %v358 = vadd.f32 0.0, %v357
  %359 = vmatmul.f32.gmra.mxu0 %v316
  %v360 = vpop.f32.mrf.mxu0
  %v361 = vadd.f32 0.0, %v360
  %362 = vmatmul.f32.gmra.mxu0 %v319
  %v363 = vpop.f32.mrf.mxu0
  %v364 = vadd.f32 0.0, %v363
  %365 = vmatmul.f32.gmra.mxu0 %v322
  %v366 = vpop.f32.mrf.mxu0
  %v367 = vadd.f32 0.0, %v366
  %368 = vmatmul.f32.gmra.mxu0 %v325
  %v369 = vpop.f32.mrf.mxu0
  %v370 = vadd.f32 0.0, %v369
  %371 = vmatmul.f32.gmra.mxu0 %v328
  %v372 = vpop.f32.mrf.mxu0
  %v373 = vadd.f32 0.0, %v372
  %374 = vmatmul.f32.gmra.mxu0 %v331
  %v375 = vpop.f32.mrf.mxu0
  %v376 = vadd.f32 0.0, %v375
  %377 = vdwg.mxu0
  %378 = vrot.lane.b32.xlu0 %v164, 64
  %v379 = vpop.permute.xlu0 %378
  %380 = vrot.lane.b32.xlu0 %v167, 64
  %v381 = vpop.permute.xlu0 %380
  %v384 = vmul.f32 %v355, %v379
  %v385 = vmul.f32 %v358, %v381
  %386 = vrot.lane.b32.xlu0 %v170, 64
  %v387 = vpop.permute.xlu0 %386
  %388 = vrot.lane.b32.xlu0 %v173, 64
  %v389 = vpop.permute.xlu0 %388
  %v392 = vmul.f32 %v361, %v387
  %v393 = vmul.f32 %v364, %v389
  %v394 = vadd.f32 %v384, %v392
  %v395 = vadd.f32 %v385, %v393
  %v396 = vmul.f32 %v367, %v379
  %v397 = vmul.f32 %v370, %v381
  %v398 = vmul.f32 %v373, %v387
  %v399 = vmul.f32 %v376, %v389
  %v400 = vadd.f32 %v396, %v398
  %v401 = vadd.f32 %v397, %v399
  %v402 = vperm.slane %v125, 0
  %v404 = vsel %vm133, %v394, 0
  %v407 = vsel %vm133, %v395, 0
  %v410 = vsel %vm133, %v400, 0
  %v413 = vsel %vm133, %v401, 0
  %415 = vmatpush.msra.mxu0 0.0
  %416 = vmatpush.msra.mxu0 0.0
  %417 = vmatpush.msra.mxu0 0.0
  %418 = vmatpush.msra.mxu0 0.0
  %419 = vmatpush.msra.mxu0 0.0
  %420 = vmatpush.msra.mxu0 0.0
  %421 = vmatpush.msra.mxu0 0.0
  %422 = vmatpush.msra.mxu0 0.0
  %423 = vmatpush.msra.mxu0 0.0
  %424 = vmatpush.msra.mxu0 0.0
  %425 = vmatpush.msra.mxu0 0.0
  %426 = vmatpush.msra.mxu0 0.0
  %427 = vmatpush.msra.mxu0 %v111
  %428 = vmatpush.msra.mxu0 %v110
  %429 = vmatpush.msra.mxu0 %v109
  %430 = vmatpush.msra.mxu0 %v108
  %431 = vmatmul.f32.gmra.mxu0 %v404
  %v432 = vpop.f32.mrf.mxu0
  %v433 = vadd.f32 %v402, %v432
  %434 = vmatmul.f32.gmra.mxu0 %v407
  %v435 = vpop.f32.mrf.mxu0
  %v436 = vadd.f32 %v402, %v435
  %437 = vmatmul.f32.gmra.mxu0 %v410
  %v438 = vpop.f32.mrf.mxu0
  %v439 = vadd.f32 %v402, %v438
  %440 = vmatmul.f32.gmra.mxu0 %v413
  %v441 = vpop.f32.mrf.mxu0
  %v442 = vadd.f32 %v402, %v441
  %443 = vdwg.mxu0
  %v444 = vadd.f32 %v100, %v433
  %v445 = vadd.f32 %v101, %v436
  %v446 = vadd.f32 %v102, %v439
  %v447 = vadd.f32 %v103, %v442
  %v448 = vsel %vm133, %v444, 0.0
  %449 = vadd.xlane.f32.xlu0 %v448
  %v450 = vpop.xlane.xlu0 %449
  %v451 = vsel %vm133, %v445, 0.0
  %452 = vadd.xlane.f32.xlu0 %v451
  %v453 = vpop.xlane.xlu0 %452
  %v454 = vsel %vm133, %v446, 0.0
  %455 = vadd.xlane.f32.xlu0 %v454
  %v456 = vpop.xlane.xlu0 %455
  %v457 = vsel %vm133, %v447, 0.0
  %458 = vadd.xlane.f32.xlu0 %v457
  %v459 = vpop.xlane.xlu0 %458
  %v460 = vrcp.pop 32.0
  %v461 = vmul.f32 32.0, %v460
  %v462 = vsub.f32 1.0, %v461
  %v463 = vmul.f32 %v460, %v462
  %v464 = vadd.f32 %v460, %v463
  %vm465 = vweird.f32 %v460
  %v466 = vsel %vm465, %v460, %v464
  %v467 = vmul.f32 %v450, %v466
  %v468 = vmul.f32 %v453, %v466
  %v469 = vmul.f32 %v456, %v466
  %v470 = vmul.f32 %v459, %v466
  %v471 = vsub.f32 %v444, %v467
  %v472 = vsub.f32 %v445, %v468
  %v473 = vsub.f32 %v446, %v469
  %v474 = vsub.f32 %v447, %v470
  %v475 = vmul.f32 %v471, %v471
  %v476 = vmul.f32 %v472, %v472
  %v477 = vmul.f32 %v473, %v473
  %v478 = vmul.f32 %v474, %v474
  %v479 = vsel %vm133, %v475, 0.0
  %480 = vadd.xlane.f32.xlu0 %v479
  %v481 = vpop.xlane.xlu0 %480
  %v482 = vsel %vm133, %v476, 0.0
  %483 = vadd.xlane.f32.xlu0 %v482
  %v484 = vpop.xlane.xlu0 %483
  %v485 = vsel %vm133, %v477, 0.0
  %486 = vadd.xlane.f32.xlu0 %v485
  %v487 = vpop.xlane.xlu0 %486
  %v488 = vsel %vm133, %v478, 0.0
  %489 = vadd.xlane.f32.xlu0 %v488
  %v490 = vpop.xlane.xlu0 %489
  %v491 = vmul.f32 %v481, %v466
  %v492 = vmul.f32 %v484, %v466
  %v493 = vmul.f32 %v487, %v466
  %v494 = vmul.f32 %v490, %v466
  %v495 = vadd.f32 %v491, 1e-05
  %v496 = vadd.f32 %v492, 1e-05
  %v497 = vadd.f32 %v493, 1e-05
  %v498 = vadd.f32 %v494, 1e-05
  %v499 = vrsqrt.pop %v495
  %v500 = vmul.f32 %v499, %v495
  %v501 = vmul.f32 %v500, %v499
  %v502 = vmul.f32 0.5, %v501
  %v503 = vsub.f32 1.5, %v502
  %v504 = vmul.f32 %v499, %v503
  %vm505 = vweird.f32 %v495
  %vm506 = vweird.f32 %v499
  %vm507 = vmor %vm505, %vm506
  %v508 = vsel %vm507, %v499, %v504
  %v509 = vrsqrt.pop %v496
  %v510 = vmul.f32 %v509, %v496
  %v511 = vmul.f32 %v510, %v509
  %v512 = vmul.f32 0.5, %v511
  %v513 = vsub.f32 1.5, %v512
  %v514 = vmul.f32 %v509, %v513
  %vm515 = vweird.f32 %v496
  %vm516 = vweird.f32 %v509
  %vm517 = vmor %vm515, %vm516
  %v518 = vsel %vm517, %v509, %v514
  %v519 = vrsqrt.pop %v497
  %v520 = vmul.f32 %v519, %v497
  %v521 = vmul.f32 %v520, %v519
  %v522 = vmul.f32 0.5, %v521
  %v523 = vsub.f32 1.5, %v522
  %v524 = vmul.f32 %v519, %v523
  %vm525 = vweird.f32 %v497
  %vm526 = vweird.f32 %v519
  %vm527 = vmor %vm525, %vm526
  %v528 = vsel %vm527, %v519, %v524
  %v529 = vrsqrt.pop %v498
  %v530 = vmul.f32 %v529, %v498
  %v531 = vmul.f32 %v530, %v529
  %v532 = vmul.f32 0.5, %v531
  %v533 = vsub.f32 1.5, %v532
  %v534 = vmul.f32 %v529, %v533
  %vm535 = vweird.f32 %v498
  %vm536 = vweird.f32 %v529
  %vm537 = vmor %vm535, %vm536
  %v538 = vsel %vm537, %v529, %v534
  %v539 = vmul.f32 %v471, %v508
  %v540 = vmul.f32 %v472, %v518
  %v541 = vmul.f32 %v473, %v528
  %v542 = vmul.f32 %v474, %v538
  %v543 = vperm.slane %v126, 0
  %v544 = vmul.f32 %v539, %v543
  %v545 = vmul.f32 %v540, %v543
  %v546 = vmul.f32 %v541, %v543
  %v547 = vmul.f32 %v542, %v543
  %v548 = vperm.slane %v127, 0
  %v549 = vadd.f32 %v544, %v548
  %v550 = vadd.f32 %v545, %v548
  %v551 = vadd.f32 %v546, %v548
  %v552 = vadd.f32 %v547, %v548
  %v553 = vperm.slane %v128, 0
  %v555 = vsel %vm133, %v549, 0
  %v558 = vsel %vm133, %v550, 0
  %v561 = vsel %vm133, %v551, 0
  %v564 = vsel %vm133, %v552, 0
  %566 = vmatpush.msra.mxu0 0.0
  %567 = vmatpush.msra.mxu0 0.0
  %568 = vmatpush.msra.mxu0 0.0
  %569 = vmatpush.msra.mxu0 0.0
  %570 = vmatpush.msra.mxu0 0.0
  %571 = vmatpush.msra.mxu0 0.0
  %572 = vmatpush.msra.mxu0 0.0
  %573 = vmatpush.msra.mxu0 0.0
  %574 = vmatpush.msra.mxu0 0.0
  %575 = vmatpush.msra.mxu0 0.0
  %576 = vmatpush.msra.mxu0 0.0
  %577 = vmatpush.msra.mxu0 0.0
  %578 = vmatpush.msra.mxu0 %v115
  %579 = vmatpush.msra.mxu0 %v114
  %580 = vmatpush.msra.mxu0 %v113
  %581 = vmatpush.msra.mxu0 %v112
  %582 = vmatmul.f32.gmra.mxu0 %v555
  %v583 = vpop.f32.mrf.mxu0
  %v584 = vadd.f32 %v553, %v583
  %585 = vmatmul.f32.gmra.mxu0 %v558
  %v586 = vpop.f32.mrf.mxu0
  %v587 = vadd.f32 %v553, %v586
  %588 = vmatmul.f32.gmra.mxu0 %v561
  %v589 = vpop.f32.mrf.mxu0
  %v590 = vadd.f32 %v553, %v589
  %591 = vmatmul.f32.gmra.mxu0 %v564
  %v592 = vpop.f32.mrf.mxu0
  %v593 = vadd.f32 %v553, %v592
  %594 = vdwg.mxu0
  %v595 = vmax.f32 %v584, 0.0
  %v596 = vmax.f32 %v587, 0.0
  %v597 = vmax.f32 %v590, 0.0
  %v598 = vmax.f32 %v593, 0.0
  %v599 = vperm.slane %v129, 0
  %vm600 = vcmask 523264
  %v602 = vsel %vm600, %v595, 0
  %v605 = vsel %vm600, %v596, 0
  %v608 = vsel %vm600, %v597, 0
  %v611 = vsel %vm600, %v598, 0
  %613 = vmatpush.msra.mxu0 0.0
  %614 = vmatpush.msra.mxu0 0.0
  %615 = vmatpush.msra.mxu0 0.0
  %616 = vmatpush.msra.mxu0 0.0
  %617 = vmatpush.msra.mxu0 0.0
  %618 = vmatpush.msra.mxu0 0.0
  %619 = vmatpush.msra.mxu0 0.0
  %620 = vmatpush.msra.mxu0 0.0
  %621 = vmatpush.msra.mxu0 %v123
  %622 = vmatpush.msra.mxu0 %v122
  %623 = vmatpush.msra.mxu0 %v121
  %624 = vmatpush.msra.mxu0 %v120
  %625 = vmatpush.msra.mxu0 %v119
  %626 = vmatpush.msra.mxu0 %v118
  %627 = vmatpush.msra.mxu0 %v117
  %628 = vmatpush.msra.mxu0 %v116
  %629 = vmatmul.f32.gmra.mxu0 %v602
  %v630 = vpop.f32.mrf.mxu0
  %v631 = vadd.f32 %v599, %v630
  %632 = vmatmul.f32.gmra.mxu0 %v605
  %v633 = vpop.f32.mrf.mxu0
  %v634 = vadd.f32 %v599, %v633
  %635 = vmatmul.f32.gmra.mxu0 %v608
  %v636 = vpop.f32.mrf.mxu0
  %v637 = vadd.f32 %v599, %v636
  %638 = vmatmul.f32.gmra.mxu0 %v611
  %v639 = vpop.f32.mrf.mxu0
  %v640 = vadd.f32 %v599, %v639
  %641 = vdwg.mxu0
  %v642 = vadd.f32 %v549, %v631
  %v643 = vadd.f32 %v550, %v634
  %v644 = vadd.f32 %v551, %v637
  %v645 = vadd.f32 %v552, %v640
  %v646 = vsel %vm133, %v642, 0.0
  %647 = vadd.xlane.f32.xlu0 %v646
  %v648 = vpop.xlane.xlu0 %647
  %v649 = vsel %vm133, %v643, 0.0
  %650 = vadd.xlane.f32.xlu0 %v649
  %v651 = vpop.xlane.xlu0 %650
  %v652 = vsel %vm133, %v644, 0.0
  %653 = vadd.xlane.f32.xlu0 %v652
  %v654 = vpop.xlane.xlu0 %653
  %v655 = vsel %vm133, %v645, 0.0
  %656 = vadd.xlane.f32.xlu0 %v655
  %v657 = vpop.xlane.xlu0 %656
  %v658 = vmul.f32 %v648, %v466
  %v659 = vmul.f32 %v651, %v466
  %v660 = vmul.f32 %v654, %v466
  %v661 = vmul.f32 %v657, %v466
  %v662 = vsub.f32 %v642, %v658
  %v663 = vsub.f32 %v643, %v659
  %v664 = vsub.f32 %v644, %v660
  %v665 = vsub.f32 %v645, %v661
  %v666 = vmul.f32 %v662, %v662
  %v667 = vmul.f32 %v663, %v663
  %v668 = vmul.f32 %v664, %v664
  %v669 = vmul.f32 %v665, %v665
  %v670 = vsel %vm133, %v666, 0.0
  %671 = vadd.xlane.f32.xlu0 %v670
  %v672 = vpop.xlane.xlu0 %671
  %v673 = vsel %vm133, %v667, 0.0
  %674 = vadd.xlane.f32.xlu0 %v673
  %v675 = vpop.xlane.xlu0 %674
  %v676 = vsel %vm133, %v668, 0.0
  %677 = vadd.xlane.f32.xlu0 %v676
  %v678 = vpop.xlane.xlu0 %677
  %v679 = vsel %vm133, %v669, 0.0
  %680 = vadd.xlane.f32.xlu0 %v679
  %v681 = vpop.xlane.xlu0 %680
  %v682 = vmul.f32 %v672, %v466
  %v683 = vmul.f32 %v675, %v466
  %v684 = vmul.f32 %v678, %v466
  %v685 = vmul.f32 %v681, %v466
  %v686 = vadd.f32 %v682, 1e-05
  %v687 = vadd.f32 %v683, 1e-05
  %v688 = vadd.f32 %v684, 1e-05
  %v689 = vadd.f32 %v685, 1e-05
  %v690 = vrsqrt.pop %v686
  %v691 = vmul.f32 %v690, %v686
  %v692 = vmul.f32 %v691, %v690
  %v693 = vmul.f32 0.5, %v692
  %v694 = vsub.f32 1.5, %v693
  %v695 = vmul.f32 %v690, %v694
  %vm696 = vweird.f32 %v686
  %vm697 = vweird.f32 %v690
  %vm698 = vmor %vm696, %vm697
  %v699 = vsel %vm698, %v690, %v695
  %v700 = vrsqrt.pop %v687
  %v701 = vmul.f32 %v700, %v687
  %v702 = vmul.f32 %v701, %v700
  %v703 = vmul.f32 0.5, %v702
  %v704 = vsub.f32 1.5, %v703
  %v705 = vmul.f32 %v700, %v704
  %vm706 = vweird.f32 %v687
  %vm707 = vweird.f32 %v700
  %vm708 = vmor %vm706, %vm707
  %v709 = vsel %vm708, %v700, %v705
  %v710 = vrsqrt.pop %v688
  %v711 = vmul.f32 %v710, %v688
  %v712 = vmul.f32 %v711, %v710
  %v713 = vmul.f32 0.5, %v712
  %v714 = vsub.f32 1.5, %v713
  %v715 = vmul.f32 %v710, %v714
  %vm716 = vweird.f32 %v688
  %vm717 = vweird.f32 %v710
  %vm718 = vmor %vm716, %vm717
  %v719 = vsel %vm718, %v710, %v715
  %v720 = vrsqrt.pop %v689
  %v721 = vmul.f32 %v720, %v689
  %v722 = vmul.f32 %v721, %v720
  %v723 = vmul.f32 0.5, %v722
  %v724 = vsub.f32 1.5, %v723
  %v725 = vmul.f32 %v720, %v724
  %vm726 = vweird.f32 %v689
  %vm727 = vweird.f32 %v720
  %vm728 = vmor %vm726, %vm727
  %v729 = vsel %vm728, %v720, %v725
  %v730 = vmul.f32 %v662, %v699
  %v731 = vmul.f32 %v663, %v709
  %v732 = vmul.f32 %v664, %v719
  %v733 = vmul.f32 %v665, %v729
  %v734 = vperm.slane %v130, 0
  %v735 = vmul.f32 %v730, %v734
  %v736 = vmul.f32 %v731, %v734
  %v737 = vmul.f32 %v732, %v734
  %v738 = vmul.f32 %v733, %v734
  %v739 = vperm.slane %v131, 0
  %v740 = vadd.f32 %v735, %v739
  %v741 = vadd.f32 %v736, %v739
  %v742 = vadd.f32 %v737, %v739
  %v743 = vadd.f32 %v738, %v739
  %s744 = scalar_lea.vmem %s4, 32
  %v745 = vld [vmem:[%s744] sm:$0xff]
  %v746 = vld [vmem:[%s744 + $0x8] sm:$0xff]
  %v747 = vld [vmem:[%s744 + $0x10] sm:$0xff]
  %v748 = vld [vmem:[%s744 + $0x18] sm:$0xff]
  %s749 = scalar_lea.vmem %s5, 32
  %v750 = vld [vmem:[%s749] sm:$0xff]
  %v751 = vld [vmem:[%s749 + $0x8] sm:$0xff]
  %v752 = vld [vmem:[%s749 + $0x10] sm:$0xff]
  %v753 = vld [vmem:[%s749 + $0x18] sm:$0xff]
  %s754 = scalar_lea.vmem %s6, 32
  %v755 = vld [vmem:[%s754] sm:$0xff]
  %v756 = vld [vmem:[%s754 + $0x8] sm:$0xff]
  %v757 = vld [vmem:[%s754 + $0x10] sm:$0xff]
  %v758 = vld [vmem:[%s754 + $0x18] sm:$0xff]
  %s759 = scalar_lea.vmem %s7, 64
  %v760 = vld [vmem:[%s759] sm:$0xff]
  %v761 = vld [vmem:[%s759 + $0x8] sm:$0xff]
  %v762 = vld [vmem:[%s759 + $0x10] sm:$0xff]
  %v763 = vld [vmem:[%s759 + $0x18] sm:$0xff]
  %v764 = vld [vmem:[%s759 + $0x20] sm:$0xff]
  %v765 = vld [vmem:[%s759 + $0x28] sm:$0xff]
  %v766 = vld [vmem:[%s759 + $0x30] sm:$0xff]
  %v767 = vld [vmem:[%s759 + $0x38] sm:$0xff]
  %v768 = vld [vmem:[%s8 + $0xa] sm:$0x1]
  %v769 = vld [vmem:[%s8 + $0xb] sm:$0x1]
  %v770 = vld [vmem:[%s8 + $0xc] sm:$0x1]
  %v771 = vld [vmem:[%s8 + $0xd] sm:$0x1]
  %v772 = vld [vmem:[%s8 + $0xe] sm:$0x1]
  %v773 = vld [vmem:[%s8 + $0xf] sm:$0x1]
  %v774 = vld [vmem:[%s8 + $0x10] sm:$0x1]
  %v775 = vld [vmem:[%s8 + $0x11] sm:$0x1]
  %v776 = vperm.slane %v768, 0
  %v778 = vsel %vm133, %v740, 0
  %v781 = vsel %vm133, %v741, 0
  %v784 = vsel %vm133, %v742, 0
  %v787 = vsel %vm133, %v743, 0
  %789 = vmatpush.msra.mxu0 0.0
  %790 = vmatpush.msra.mxu0 0.0
  %791 = vmatpush.msra.mxu0 0.0
  %792 = vmatpush.msra.mxu0 0.0
  %793 = vmatpush.msra.mxu0 0.0
  %794 = vmatpush.msra.mxu0 0.0
  %795 = vmatpush.msra.mxu0 0.0
  %796 = vmatpush.msra.mxu0 0.0
  %797 = vmatpush.msra.mxu0 0.0
  %798 = vmatpush.msra.mxu0 0.0
  %799 = vmatpush.msra.mxu0 0.0
  %800 = vmatpush.msra.mxu0 0.0
  %801 = vmatpush.msra.mxu0 %v748
  %802 = vmatpush.msra.mxu0 %v747
  %803 = vmatpush.msra.mxu0 %v746
  %804 = vmatpush.msra.mxu0 %v745
  %805 = vmatmul.f32.gmra.mxu0 %v778
  %v806 = vpop.f32.mrf.mxu0
  %v807 = vadd.f32 %v776, %v806
  %808 = vmatmul.f32.gmra.mxu0 %v781
  %v809 = vpop.f32.mrf.mxu0
  %v810 = vadd.f32 %v776, %v809
  %811 = vmatmul.f32.gmra.mxu0 %v784
  %v812 = vpop.f32.mrf.mxu0
  %v813 = vadd.f32 %v776, %v812
  %814 = vmatmul.f32.gmra.mxu0 %v787
  %v815 = vpop.f32.mrf.mxu0
  %v816 = vadd.f32 %v776, %v815
  %817 = vdwg.mxu0
  %820 = vrot.lane.b32.xlu0 %v807, 96
  %v821 = vpop.permute.xlu0 %820
  %822 = vrot.lane.b32.xlu0 %v810, 96
  %v823 = vpop.permute.xlu0 %822
  %v826 = vmul.f32 %v807, %v821
  %v827 = vmul.f32 %v810, %v823
  %830 = vrot.lane.b32.xlu0 %v813, 96
  %v831 = vpop.permute.xlu0 %830
  %832 = vrot.lane.b32.xlu0 %v816, 96
  %v833 = vpop.permute.xlu0 %832
  %v836 = vmul.f32 %v807, %v831
  %v837 = vmul.f32 %v810, %v833
  %v838 = vmul.f32 %v813, %v821
  %v839 = vmul.f32 %v816, %v823
  %v840 = vmul.f32 %v813, %v831
  %v841 = vmul.f32 %v816, %v833
  %v843 = vsel %vm133, %v826, 0
  %v846 = vsel %vm133, %v827, 0
  %v849 = vsel %vm133, %v836, 0
  %v852 = vsel %vm133, %v837, 0
  %v855 = vsel %vm133, %v838, 0
  %v858 = vsel %vm133, %v839, 0
  %v861 = vsel %vm133, %v840, 0
  %v864 = vsel %vm133, %v841, 0
  %866 = vmatpush.msra.mxu0 0.0
  %867 = vmatpush.msra.mxu0 0.0
  %868 = vmatpush.msra.mxu0 0.0
  %869 = vmatpush.msra.mxu0 0.0
  %870 = vmatpush.msra.mxu0 0.0
  %871 = vmatpush.msra.mxu0 0.0
  %872 = vmatpush.msra.mxu0 0.0
  %873 = vmatpush.msra.mxu0 0.0
  %874 = vmatpush.msra.mxu0 0.0
  %875 = vmatpush.msra.mxu0 0.0
  %876 = vmatpush.msra.mxu0 0.0
  %877 = vmatpush.msra.mxu0 0.0
  %878 = vmatpush.msra.mxu0 %v43
  %879 = vmatpush.msra.mxu0 %v42
  %880 = vmatpush.msra.mxu0 %v41
  %881 = vmatpush.msra.mxu0 %v40
  %882 = vmatmul.f32.gmra.mxu0 %v843
  %v883 = vpop.f32.mrf.mxu0
  %v884 = vadd.f32 0.0, %v883
  %885 = vmatmul.f32.gmra.mxu0 %v846
  %v886 = vpop.f32.mrf.mxu0
  %v887 = vadd.f32 0.0, %v886
  %888 = vmatmul.f32.gmra.mxu0 %v849
  %v889 = vpop.f32.mrf.mxu0
  %v890 = vadd.f32 0.0, %v889
  %891 = vmatmul.f32.gmra.mxu0 %v852
  %v892 = vpop.f32.mrf.mxu0
  %v893 = vadd.f32 0.0, %v892
  %894 = vmatmul.f32.gmra.mxu0 %v855
  %v895 = vpop.f32.mrf.mxu0
  %v896 = vadd.f32 0.0, %v895
  %897 = vmatmul.f32.gmra.mxu0 %v858
  %v898 = vpop.f32.mrf.mxu0
  %v899 = vadd.f32 0.0, %v898
  %900 = vmatmul.f32.gmra.mxu0 %v861
  %v901 = vpop.f32.mrf.mxu0
  %v902 = vadd.f32 0.0, %v901
  %903 = vmatmul.f32.gmra.mxu0 %v864
  %v904 = vpop.f32.mrf.mxu0
  %v905 = vadd.f32 0.0, %v904
  %906 = vdwg.mxu0
  %v907 = vmax.f32 %v884, %v890
  %v908 = vmax.f32 %v887, %v893
  %v909 = vsub.f32 %v884, %v907
  %v910 = vsub.f32 %v887, %v908
  %v911 = vmul.f32 %v909, 1.442695
  %v912 = vpow.pop %v911
  %v913 = vmul.f32 %v910, 1.442695
  %v914 = vpow.pop %v913
  %v915 = vsub.f32 %v890, %v907
  %v916 = vsub.f32 %v893, %v908
  %v917 = vmul.f32 %v915, 1.442695
  %v918 = vpow.pop %v917
  %v919 = vmul.f32 %v916, 1.442695
  %v920 = vpow.pop %v919
  %v921 = vadd.f32 %v912, %v918
  %v922 = vadd.f32 %v914, %v920
  %v923 = vrcp.pop %v921
  %v924 = vrcp.pop %v922
  %v925 = vmul.f32 %v912, %v923
  %v926 = vmul.f32 %v914, %v924
  %v927 = vmul.f32 %v918, %v923
  %v928 = vmul.f32 %v920, %v924
  %v929 = vmax.f32 %v896, %v902
  %v930 = vmax.f32 %v899, %v905
  %v931 = vsub.f32 %v896, %v929
  %v932 = vsub.f32 %v899, %v930
  %v933 = vmul.f32 %v931, 1.442695
  %v934 = vpow.pop %v933
  %v935 = vmul.f32 %v932, 1.442695
  %v936 = vpow.pop %v935
  %v937 = vsub.f32 %v902, %v929
  %v938 = vsub.f32 %v905, %v930
  %v939 = vmul.f32 %v937, 1.442695
  %v940 = vpow.pop %v939
  %v941 = vmul.f32 %v938, 1.442695
  %v942 = vpow.pop %v941
  %v943 = vadd.f32 %v934, %v940
  %v944 = vadd.f32 %v936, %v942
  %v945 = vrcp.pop %v943
  %v946 = vrcp.pop %v944
  %v947 = vmul.f32 %v934, %v945
  %v948 = vmul.f32 %v936, %v946
  %v949 = vmul.f32 %v940, %v945
  %v950 = vmul.f32 %v942, %v946
  %v952 = vsel %vm308, %v925, 0
  %v955 = vsel %vm308, %v926, 0
  %v958 = vsel %vm308, %v927, 0
  %v961 = vsel %vm308, %v928, 0
  %v964 = vsel %vm308, %v947, 0
  %v967 = vsel %vm308, %v948, 0
  %v970 = vsel %vm308, %v949, 0
  %v973 = vsel %vm308, %v950, 0
  %975 = vmatpush.msra.mxu0 0.0
  %976 = vmatpush.msra.mxu0 0.0
  %977 = vmatpush.msra.mxu0 0.0
  %978 = vmatpush.msra.mxu0 0.0
  %979 = vmatpush.msra.mxu0 0.0
  %980 = vmatpush.msra.mxu0 0.0
  %981 = vmatpush.msra.mxu0 0.0
  %982 = vmatpush.msra.mxu0 0.0
  %983 = vmatpush.msra.mxu0 0.0
  %984 = vmatpush.msra.mxu0 0.0
  %985 = vmatpush.msra.mxu0 0.0
  %986 = vmatpush.msra.mxu0 0.0
  %987 = vmatpush.msra.mxu0 0.0
  %988 = vmatpush.msra.mxu0 0.0
  %989 = vmatpush.msra.mxu0 0.0
  %990 = vmatpush.msra.mxu0 %v335
  %991 = vmatmul.f32.gmra.mxu0 %v952
  %v992 = vpop.f32.mrf.mxu0
  %v993 = vadd.f32 0.0, %v992
  %994 = vmatmul.f32.gmra.mxu0 %v955
  %v995 = vpop.f32.mrf.mxu0
  %v996 = vadd.f32 0.0, %v995
  %997 = vmatmul.f32.gmra.mxu0 %v958
  %v998 = vpop.f32.mrf.mxu0
  %v999 = vadd.f32 0.0, %v998
  %1000 = vmatmul.f32.gmra.mxu0 %v961
  %v1001 = vpop.f32.mrf.mxu0
  %v1002 = vadd.f32 0.0, %v1001
  %1003 = vmatmul.f32.gmra.mxu0 %v964
  %v1004 = vpop.f32.mrf.mxu0
  %v1005 = vadd.f32 0.0, %v1004
  %1006 = vmatmul.f32.gmra.mxu0 %v967
  %v1007 = vpop.f32.mrf.mxu0
  %v1008 = vadd.f32 0.0, %v1007
  %1009 = vmatmul.f32.gmra.mxu0 %v970
  %v1010 = vpop.f32.mrf.mxu0
  %v1011 = vadd.f32 0.0, %v1010
  %1012 = vmatmul.f32.gmra.mxu0 %v973
  %v1013 = vpop.f32.mrf.mxu0
  %v1014 = vadd.f32 0.0, %v1013
  %1015 = vdwg.mxu0
  %1016 = vrot.lane.b32.xlu0 %v807, 64
  %v1017 = vpop.permute.xlu0 %1016
  %1018 = vrot.lane.b32.xlu0 %v810, 64
  %v1019 = vpop.permute.xlu0 %1018
  %v1022 = vmul.f32 %v993, %v1017
  %v1023 = vmul.f32 %v996, %v1019
  %1024 = vrot.lane.b32.xlu0 %v813, 64
  %v1025 = vpop.permute.xlu0 %1024
  %1026 = vrot.lane.b32.xlu0 %v816, 64
  %v1027 = vpop.permute.xlu0 %1026
  %v1030 = vmul.f32 %v999, %v1025
  %v1031 = vmul.f32 %v1002, %v1027
  %v1032 = vadd.f32 %v1022, %v1030
  %v1033 = vadd.f32 %v1023, %v1031
  %v1034 = vmul.f32 %v1005, %v1017
  %v1035 = vmul.f32 %v1008, %v1019
  %v1036 = vmul.f32 %v1011, %v1025
  %v1037 = vmul.f32 %v1014, %v1027
  %v1038 = vadd.f32 %v1034, %v1036
  %v1039 = vadd.f32 %v1035, %v1037
  %v1040 = vperm.slane %v769, 0
  %v1042 = vsel %vm133, %v1032, 0
  %v1045 = vsel %vm133, %v1033, 0
  %v1048 = vsel %vm133, %v1038, 0
  %v1051 = vsel %vm133, %v1039, 0
  %1053 = vmatpush.msra.mxu0 0.0
  %1054 = vmatpush.msra.mxu0 0.0
  %1055 = vmatpush.msra.mxu0 0.0
  %1056 = vmatpush.msra.mxu0 0.0
  %1057 = vmatpush.msra.mxu0 0.0
  %1058 = vmatpush.msra.mxu0 0.0
  %1059 = vmatpush.msra.mxu0 0.0
  %1060 = vmatpush.msra.mxu0 0.0
  %1061 = vmatpush.msra.mxu0 0.0
  %1062 = vmatpush.msra.mxu0 0.0
  %1063 = vmatpush.msra.mxu0 0.0
  %1064 = vmatpush.msra.mxu0 0.0
  %1065 = vmatpush.msra.mxu0 %v753
  %1066 = vmatpush.msra.mxu0 %v752
  %1067 = vmatpush.msra.mxu0 %v751
  %1068 = vmatpush.msra.mxu0 %v750
  %1069 = vmatmul.f32.gmra.mxu0 %v1042
  %v1070 = vpop.f32.mrf.mxu0
  %v1071 = vadd.f32 %v1040, %v1070
  %1072 = vmatmul.f32.gmra.mxu0 %v1045
  %v1073 = vpop.f32.mrf.mxu0
  %v1074 = vadd.f32 %v1040, %v1073
  %1075 = vmatmul.f32.gmra.mxu0 %v1048
  %v1076 = vpop.f32.mrf.mxu0
  %v1077 = vadd.f32 %v1040, %v1076
  %1078 = vmatmul.f32.gmra.mxu0 %v1051
  %v1079 = vpop.f32.mrf.mxu0
  %v1080 = vadd.f32 %v1040, %v1079
  %1081 = vdwg.mxu0
  %v1082 = vadd.f32 %v740, %v1071
  %v1083 = vadd.f32 %v741, %v1074
  %v1084 = vadd.f32 %v742, %v1077
  %v1085 = vadd.f32 %v743, %v1080
  %v1086 = vsel %vm133, %v1082, 0.0
  %1087 = vadd.xlane.f32.xlu0 %v1086
  %v1088 = vpop.xlane.xlu0 %1087
  %v1089 = vsel %vm133, %v1083, 0.0
  %1090 = vadd.xlane.f32.xlu0 %v1089
  %v1091 = vpop.xlane.xlu0 %1090
  %v1092 = vsel %vm133, %v1084, 0.0
  %1093 = vadd.xlane.f32.xlu0 %v1092
  %v1094 = vpop.xlane.xlu0 %1093
  %v1095 = vsel %vm133, %v1085, 0.0
  %1096 = vadd.xlane.f32.xlu0 %v1095
  %v1097 = vpop.xlane.xlu0 %1096
  %v1098 = vmul.f32 %v1088, %v466
  %v1099 = vmul.f32 %v1091, %v466
  %v1100 = vmul.f32 %v1094, %v466
  %v1101 = vmul.f32 %v1097, %v466
  %v1102 = vsub.f32 %v1082, %v1098
  %v1103 = vsub.f32 %v1083, %v1099
  %v1104 = vsub.f32 %v1084, %v1100
  %v1105 = vsub.f32 %v1085, %v1101
  %v1106 = vmul.f32 %v1102, %v1102
  %v1107 = vmul.f32 %v1103, %v1103
  %v1108 = vmul.f32 %v1104, %v1104
  %v1109 = vmul.f32 %v1105, %v1105
  %v1110 = vsel %vm133, %v1106, 0.0
  %1111 = vadd.xlane.f32.xlu0 %v1110
  %v1112 = vpop.xlane.xlu0 %1111
  %v1113 = vsel %vm133, %v1107, 0.0
  %1114 = vadd.xlane.f32.xlu0 %v1113
  %v1115 = vpop.xlane.xlu0 %1114
  %v1116 = vsel %vm133, %v1108, 0.0
  %1117 = vadd.xlane.f32.xlu0 %v1116
  %v1118 = vpop.xlane.xlu0 %1117
  %v1119 = vsel %vm133, %v1109, 0.0
  %1120 = vadd.xlane.f32.xlu0 %v1119
  %v1121 = vpop.xlane.xlu0 %1120
  %v1122 = vmul.f32 %v1112, %v466
  %v1123 = vmul.f32 %v1115, %v466
  %v1124 = vmul.f32 %v1118, %v466
  %v1125 = vmul.f32 %v1121, %v466
  %v1126 = vadd.f32 %v1122, 1e-05
  %v1127 = vadd.f32 %v1123, 1e-05
  %v1128 = vadd.f32 %v1124, 1e-05
  %v1129 = vadd.f32 %v1125, 1e-05
  %v1130 = vrsqrt.pop %v1126
  %v1131 = vmul.f32 %v1130, %v1126
  %v1132 = vmul.f32 %v1131, %v1130
  %v1133 = vmul.f32 0.5, %v1132
  %v1134 = vsub.f32 1.5, %v1133
  %v1135 = vmul.f32 %v1130, %v1134
  %vm1136 = vweird.f32 %v1126
  %vm1137 = vweird.f32 %v1130
  %vm1138 = vmor %vm1136, %vm1137
  %v1139 = vsel %vm1138, %v1130, %v1135
  %v1140 = vrsqrt.pop %v1127
  %v1141 = vmul.f32 %v1140, %v1127
  %v1142 = vmul.f32 %v1141, %v1140
  %v1143 = vmul.f32 0.5, %v1142
  %v1144 = vsub.f32 1.5, %v1143
  %v1145 = vmul.f32 %v1140, %v1144
  %vm1146 = vweird.f32 %v1127
  %vm1147 = vweird.f32 %v1140
  %vm1148 = vmor %vm1146, %vm1147
  %v1149 = vsel %vm1148, %v1140, %v1145
  %v1150 = vrsqrt.pop %v1128
  %v1151 = vmul.f32 %v1150, %v1128
  %v1152 = vmul.f32 %v1151, %v1150
  %v1153 = vmul.f32 0.5, %v1152
  %v1154 = vsub.f32 1.5, %v1153
  %v1155 = vmul.f32 %v1150, %v1154
  %vm1156 = vweird.f32 %v1128
  %vm1157 = vweird.f32 %v1150
  %vm1158 = vmor %vm1156, %vm1157
  %v1159 = vsel %vm1158, %v1150, %v1155
  %v1160 = vrsqrt.pop %v1129
  %v1161 = vmul.f32 %v1160, %v1129
  %v1162 = vmul.f32 %v1161, %v1160
  %v1163 = vmul.f32 0.5, %v1162
  %v1164 = vsub.f32 1.5, %v1163
  %v1165 = vmul.f32 %v1160, %v1164
  %vm1166 = vweird.f32 %v1129
  %vm1167 = vweird.f32 %v1160
  %vm1168 = vmor %vm1166, %vm1167
  %v1169 = vsel %vm1168, %v1160, %v1165
  %v1170 = vmul.f32 %v1102, %v1139
  %v1171 = vmul.f32 %v1103, %v1149
  %v1172 = vmul.f32 %v1104, %v1159
  %v1173 = vmul.f32 %v1105, %v1169
  %v1174 = vperm.slane %v770, 0
  %v1175 = vmul.f32 %v1170, %v1174
  %v1176 = vmul.f32 %v1171, %v1174
  %v1177 = vmul.f32 %v1172, %v1174
  %v1178 = vmul.f32 %v1173, %v1174
  %v1179 = vperm.slane %v771, 0
  %v1180 = vadd.f32 %v1175, %v1179
  %v1181 = vadd.f32 %v1176, %v1179
  %v1182 = vadd.f32 %v1177, %v1179
  %v1183 = vadd.f32 %v1178, %v1179
  %v1184 = vperm.slane %v772, 0
  %v1186 = vsel %vm133, %v1180, 0
  %v1189 = vsel %vm133, %v1181, 0
  %v1192 = vsel %vm133, %v1182, 0
  %v1195 = vsel %vm133, %v1183, 0
  %1197 = vmatpush.msra.mxu0 0.0
  %1198 = vmatpush.msra.mxu0 0.0
  %1199 = vmatpush.msra.mxu0 0.0
  %1200 = vmatpush.msra.mxu0 0.0
  %1201 = vmatpush.msra.mxu0 0.0
  %1202 = vmatpush.msra.mxu0 0.0
  %1203 = vmatpush.msra.mxu0 0.0
  %1204 = vmatpush.msra.mxu0 0.0
  %1205 = vmatpush.msra.mxu0 0.0
  %1206 = vmatpush.msra.mxu0 0.0
  %1207 = vmatpush.msra.mxu0 0.0
  %1208 = vmatpush.msra.mxu0 0.0
  %1209 = vmatpush.msra.mxu0 %v758
  %1210 = vmatpush.msra.mxu0 %v757
  %1211 = vmatpush.msra.mxu0 %v756
  %1212 = vmatpush.msra.mxu0 %v755
  %1213 = vmatmul.f32.gmra.mxu0 %v1186
  %v1214 = vpop.f32.mrf.mxu0
  %v1215 = vadd.f32 %v1184, %v1214
  %1216 = vmatmul.f32.gmra.mxu0 %v1189
  %v1217 = vpop.f32.mrf.mxu0
  %v1218 = vadd.f32 %v1184, %v1217
  %1219 = vmatmul.f32.gmra.mxu0 %v1192
  %v1220 = vpop.f32.mrf.mxu0
  %v1221 = vadd.f32 %v1184, %v1220
  %1222 = vmatmul.f32.gmra.mxu0 %v1195
  %v1223 = vpop.f32.mrf.mxu0
  %v1224 = vadd.f32 %v1184, %v1223
  %1225 = vdwg.mxu0
  %v1226 = vmax.f32 %v1215, 0.0
  %v1227 = vmax.f32 %v1218, 0.0
  %v1228 = vmax.f32 %v1221, 0.0
  %v1229 = vmax.f32 %v1224, 0.0
  %v1230 = vperm.slane %v773, 0
  %v1232 = vsel %vm600, %v1226, 0
  %v1235 = vsel %vm600, %v1227, 0
  %v1238 = vsel %vm600, %v1228, 0
  %v1241 = vsel %vm600, %v1229, 0
  %1243 = vmatpush.msra.mxu0 0.0
  %1244 = vmatpush.msra.mxu0 0.0
  %1245 = vmatpush.msra.mxu0 0.0
  %1246 = vmatpush.msra.mxu0 0.0
  %1247 = vmatpush.msra.mxu0 0.0
  %1248 = vmatpush.msra.mxu0 0.0
  %1249 = vmatpush.msra.mxu0 0.0
  %1250 = vmatpush.msra.mxu0 0.0
  %1251 = vmatpush.msra.mxu0 %v767
  %1252 = vmatpush.msra.mxu0 %v766
  %1253 = vmatpush.msra.mxu0 %v765
  %1254 = vmatpush.msra.mxu0 %v764
  %1255 = vmatpush.msra.mxu0 %v763
  %1256 = vmatpush.msra.mxu0 %v762
  %1257 = vmatpush.msra.mxu0 %v761
  %1258 = vmatpush.msra.mxu0 %v760
  %1259 = vmatmul.f32.gmra.mxu0 %v1232
  %v1260 = vpop.f32.mrf.mxu0
  %v1261 = vadd.f32 %v1230, %v1260
  %1262 = vmatmul.f32.gmra.mxu0 %v1235
  %v1263 = vpop.f32.mrf.mxu0
  %v1264 = vadd.f32 %v1230, %v1263
  %1265 = vmatmul.f32.gmra.mxu0 %v1238
  %v1266 = vpop.f32.mrf.mxu0
  %v1267 = vadd.f32 %v1230, %v1266
  %1268 = vmatmul.f32.gmra.mxu0 %v1241
  %v1269 = vpop.f32.mrf.mxu0
  %v1270 = vadd.f32 %v1230, %v1269
  %1271 = vdwg.mxu0
  %v1272 = vadd.f32 %v1180, %v1261
  %v1273 = vadd.f32 %v1181, %v1264
  %v1274 = vadd.f32 %v1182, %v1267
  %v1275 = vadd.f32 %v1183, %v1270
  %v1276 = vsel %vm133, %v1272, 0.0
  %1277 = vadd.xlane.f32.xlu0 %v1276
  %v1278 = vpop.xlane.xlu0 %1277
  %v1279 = vsel %vm133, %v1273, 0.0
  %1280 = vadd.xlane.f32.xlu0 %v1279
  %v1281 = vpop.xlane.xlu0 %1280
  %v1282 = vsel %vm133, %v1274, 0.0
  %1283 = vadd.xlane.f32.xlu0 %v1282
  %v1284 = vpop.xlane.xlu0 %1283
  %v1285 = vsel %vm133, %v1275, 0.0
  %1286 = vadd.xlane.f32.xlu0 %v1285
  %v1287 = vpop.xlane.xlu0 %1286
  %v1288 = vmul.f32 %v1278, %v466
  %v1289 = vmul.f32 %v1281, %v466
  %v1290 = vmul.f32 %v1284, %v466
  %v1291 = vmul.f32 %v1287, %v466
  %v1292 = vsub.f32 %v1272, %v1288
  %v1293 = vsub.f32 %v1273, %v1289
  %v1294 = vsub.f32 %v1274, %v1290
  %v1295 = vsub.f32 %v1275, %v1291
  %v1296 = vmul.f32 %v1292, %v1292
  %v1297 = vmul.f32 %v1293, %v1293
  %v1298 = vmul.f32 %v1294, %v1294
  %v1299 = vmul.f32 %v1295, %v1295
  %v1300 = vsel %vm133, %v1296, 0.0
  %1301 = vadd.xlane.f32.xlu0 %v1300
  %v1302 = vpop.xlane.xlu0 %1301
  %v1303 = vsel %vm133, %v1297, 0.0
  %1304 = vadd.xlane.f32.xlu0 %v1303
  %v1305 = vpop.xlane.xlu0 %1304
  %v1306 = vsel %vm133, %v1298, 0.0
  %1307 = vadd.xlane.f32.xlu0 %v1306
  %v1308 = vpop.xlane.xlu0 %1307
  %v1309 = vsel %vm133, %v1299, 0.0
  %1310 = vadd.xlane.f32.xlu0 %v1309
  %v1311 = vpop.xlane.xlu0 %1310
  %v1312 = vmul.f32 %v1302, %v466
  %v1313 = vmul.f32 %v1305, %v466
  %v1314 = vmul.f32 %v1308, %v466
  %v1315 = vmul.f32 %v1311, %v466
  %v1316 = vadd.f32 %v1312, 1e-05
  %v1317 = vadd.f32 %v1313, 1e-05
  %v1318 = vadd.f32 %v1314, 1e-05
  %v1319 = vadd.f32 %v1315, 1e-05
  %v1320 = vrsqrt.pop %v1316
  %v1321 = vmul.f32 %v1320, %v1316
  %v1322 = vmul.f32 %v1321, %v1320
  %v1323 = vmul.f32 0.5, %v1322
  %v1324 = vsub.f32 1.5, %v1323
  %v1325 = vmul.f32 %v1320, %v1324
  %vm1326 = vweird.f32 %v1316
  %vm1327 = vweird.f32 %v1320
  %vm1328 = vmor %vm1326, %vm1327
  %v1329 = vsel %vm1328, %v1320, %v1325
  %v1330 = vrsqrt.pop %v1317
  %v1331 = vmul.f32 %v1330, %v1317
  %v1332 = vmul.f32 %v1331, %v1330
  %v1333 = vmul.f32 0.5, %v1332
  %v1334 = vsub.f32 1.5, %v1333
  %v1335 = vmul.f32 %v1330, %v1334
  %vm1336 = vweird.f32 %v1317
  %vm1337 = vweird.f32 %v1330
  %vm1338 = vmor %vm1336, %vm1337
  %v1339 = vsel %vm1338, %v1330, %v1335
  %v1340 = vrsqrt.pop %v1318
  %v1341 = vmul.f32 %v1340, %v1318
  %v1342 = vmul.f32 %v1341, %v1340
  %v1343 = vmul.f32 0.5, %v1342
  %v1344 = vsub.f32 1.5, %v1343
  %v1345 = vmul.f32 %v1340, %v1344
  %vm1346 = vweird.f32 %v1318
  %vm1347 = vweird.f32 %v1340
  %vm1348 = vmor %vm1346, %vm1347
  %v1349 = vsel %vm1348, %v1340, %v1345
  %v1350 = vrsqrt.pop %v1319
  %v1351 = vmul.f32 %v1350, %v1319
  %v1352 = vmul.f32 %v1351, %v1350
  %v1353 = vmul.f32 0.5, %v1352
  %v1354 = vsub.f32 1.5, %v1353
  %v1355 = vmul.f32 %v1350, %v1354
  %vm1356 = vweird.f32 %v1319
  %vm1357 = vweird.f32 %v1350
  %vm1358 = vmor %vm1356, %vm1357
  %v1359 = vsel %vm1358, %v1350, %v1355
  %v1360 = vmul.f32 %v1292, %v1329
  %v1361 = vmul.f32 %v1293, %v1339
  %v1362 = vmul.f32 %v1294, %v1349
  %v1363 = vmul.f32 %v1295, %v1359
  %v1364 = vperm.slane %v774, 0
  %v1365 = vmul.f32 %v1360, %v1364
  %v1366 = vmul.f32 %v1361, %v1364
  %v1367 = vmul.f32 %v1362, %v1364
  %v1368 = vmul.f32 %v1363, %v1364
  %v1369 = vperm.slane %v775, 0
  %v1370 = vadd.f32 %v1365, %v1369
  %v1371 = vadd.f32 %v1366, %v1369
  %v1372 = vadd.f32 %v1367, %v1369
  %v1373 = vadd.f32 %v1368, %v1369
  %v1374 = vld [vmem:[%s3] sm:$0xff]
  %v1375 = vld [vmem:[%s3 + $0x8] sm:$0xff]
  %v1376 = vld [vmem:[%s3 + $0x10] sm:$0xff]
  %v1377 = vld [vmem:[%s3 + $0x18] sm:$0xff]
  %v1378 = vperm.slane %v39, 0
  %v1380 = vsel %vm133, %v1370, 0
  %v1383 = vsel %vm133, %v1371, 0
  %v1386 = vsel %vm133, %v1372, 0
  %v1389 = vsel %vm133, %v1373, 0
  %1391 = vmatpush.msra.mxu0 0.0
  %1392 = vmatpush.msra.mxu0 0.0
  %1393 = vmatpush.msra.mxu0 0.0
  %1394 = vmatpush.msra.mxu0 0.0
  %1395 = vmatpush.msra.mxu0 0.0
  %1396 = vmatpush.msra.mxu0 0.0
  %1397 = vmatpush.msra.mxu0 0.0
  %1398 = vmatpush.msra.mxu0 0.0
  %1399 = vmatpush.msra.mxu0 0.0
  %1400 = vmatpush.msra.mxu0 0.0
  %1401 = vmatpush.msra.mxu0 0.0
  %1402 = vmatpush.msra.mxu0 0.0
  %1403 = vmatpush.msra.mxu0 %v1377
  %1404 = vmatpush.msra.mxu0 %v1376
  %1405 = vmatpush.msra.mxu0 %v1375
  %1406 = vmatpush.msra.mxu0 %v1374
  %1407 = vmatmul.f32.gmra.mxu0 %v1380
  %v1408 = vpop.f32.mrf.mxu0
  %v1409 = vadd.f32 %v1378, %v1408
  %1410 = vmatmul.f32.gmra.mxu0 %v1383
  %v1411 = vpop.f32.mrf.mxu0
  %v1412 = vadd.f32 %v1378, %v1411
  %1413 = vmatmul.f32.gmra.mxu0 %v1386
  %v1414 = vpop.f32.mrf.mxu0
  %v1415 = vadd.f32 %v1378, %v1414
  %1416 = vmatmul.f32.gmra.mxu0 %v1389
  %v1417 = vpop.f32.mrf.mxu0
  %v1418 = vadd.f32 %v1378, %v1417
  %1419 = vdwg.mxu0
  %v1420 = vxor.u32 %v1409, 2147483648
  %v1421 = vxor.u32 %v1412, 2147483648
  %v1422 = vxor.u32 %v1415, 2147483648
  %v1423 = vxor.u32 %v1418, 2147483648
  %v1424 = vmul.f32 %v1420, 1.442695
  %v1425 = vpow.pop %v1424
  %v1426 = vmul.f32 %v1421, 1.442695
  %v1427 = vpow.pop %v1426
  %v1428 = vmul.f32 %v1422, 1.442695
  %v1429 = vpow.pop %v1428
  %v1430 = vmul.f32 %v1423, 1.442695
  %v1431 = vpow.pop %v1430
  %v1432 = vadd.f32 %v1425, 1.0
  %v1433 = vadd.f32 %v1427, 1.0
  %v1434 = vadd.f32 %v1429, 1.0
  %v1435 = vadd.f32 %v1431, 1.0
  %v1436 = vrcp.pop %v1432
  %v1437 = vmul.f32 %v1432, %v1436
  %v1438 = vsub.f32 1.0, %v1437
  %v1439 = vmul.f32 %v1436, %v1438
  %v1440 = vadd.f32 %v1436, %v1439
  %vm1441 = vweird.f32 %v1432
  %vm1442 = vweird.f32 %v1436
  %vm1443 = vmor %vm1441, %vm1442
  %v1444 = vsel %vm1443, %v1436, %v1440
  %v1445 = vand.u32 2147483647, %v1432
  %vm1446 = vcmp.eq.f32.partialorder %v1445, 8.507059e+37
  %v1447 = vand.u32 %v1432, 2147483648
  %v1448 = vor.u32 1.1754944e-38, %v1447
  %v1449 = vsel %vm1446, %v1448, %v1444
  %v1450 = vmul.f32 1.0, %v1449
  %v1451 = vrcp.pop %v1433
  %v1452 = vmul.f32 %v1433, %v1451
  %v1453 = vsub.f32 1.0, %v1452
  %v1454 = vmul.f32 %v1451, %v1453
  %v1455 = vadd.f32 %v1451, %v1454
  %vm1456 = vweird.f32 %v1433
  %vm1457 = vweird.f32 %v1451
  %vm1458 = vmor %vm1456, %vm1457
  %v1459 = vsel %vm1458, %v1451, %v1455
  %v1460 = vand.u32 2147483647, %v1433
  %vm1461 = vcmp.eq.f32.partialorder %v1460, 8.507059e+37
  %v1462 = vand.u32 %v1433, 2147483648
  %v1463 = vor.u32 1.1754944e-38, %v1462
  %v1464 = vsel %vm1461, %v1463, %v1459
  %v1465 = vmul.f32 1.0, %v1464
  %v1466 = vrcp.pop %v1434
  %v1467 = vmul.f32 %v1434, %v1466
  %v1468 = vsub.f32 1.0, %v1467
  %v1469 = vmul.f32 %v1466, %v1468
  %v1470 = vadd.f32 %v1466, %v1469
  %vm1471 = vweird.f32 %v1434
  %vm1472 = vweird.f32 %v1466
  %vm1473 = vmor %vm1471, %vm1472
  %v1474 = vsel %vm1473, %v1466, %v1470
  %v1475 = vand.u32 2147483647, %v1434
  %vm1476 = vcmp.eq.f32.partialorder %v1475, 8.507059e+37
  %v1477 = vand.u32 %v1434, 2147483648
  %v1478 = vor.u32 1.1754944e-38, %v1477
  %v1479 = vsel %vm1476, %v1478, %v1474
  %v1480 = vmul.f32 1.0, %v1479
  %v1481 = vrcp.pop %v1435
  %v1482 = vmul.f32 %v1435, %v1481
  %v1483 = vsub.f32 1.0, %v1482
  %v1484 = vmul.f32 %v1481, %v1483
  %v1485 = vadd.f32 %v1481, %v1484
  %vm1486 = vweird.f32 %v1435
  %vm1487 = vweird.f32 %v1481
  %vm1488 = vmor %vm1486, %vm1487
  %v1489 = vsel %vm1488, %v1481, %v1485
  %v1490 = vand.u32 2147483647, %v1435
  %vm1491 = vcmp.eq.f32.partialorder %v1490, 8.507059e+37
  %v1492 = vand.u32 %v1435, 2147483648
  %v1493 = vor.u32 1.1754944e-38, %v1492
  %v1494 = vsel %vm1491, %v1493, %v1489
  %v1495 = vmul.f32 1.0, %v1494
  %1496 = vst [vmem:[%s11] sm:$0xff] %v1450
  %1497 = vst [vmem:[%s11 + $0x8] sm:$0xff] %v1465
  %1498 = vst [vmem:[%s11 + $0x10] sm:$0xff] %v1480
  %1499 = vst [vmem:[%s11 + $0x18] sm:$0xff] %v1495
  // Predicated region
  $region46: #{generator_forward.1} parent=0 // pred_check
    _
  $region47: #{generator_forward.1} parent=0 // pred_check_branch
    %1501 = sbr.rel (0) target = $region49
  $region48: #{generator_forward.1} parent=0 // pred_region
    _
  $region49: #{generator_forward.1} parent=0 // pred_fallthru
    _
  // Predicated region
  $region50: #{generator_forward.1} parent=0 // pred_check
    _
  $region51: #{generator_forward.1} parent=0 // pred_check_branch
    %1503 = sbr.rel (0) target = $region53
  $region52: #{generator_forward.1} parent=0 // pred_region
    _
  $region53: #{generator_forward.1} parent=0 // pred_fallthru
    _

</llo_original>
